<compile_context>
chip_gen: v5e
topology: v5e:2x2
jax: 0.10.0
libtpu: 0.0.40
codegen_flags: <defaults>
</compile_context>

<pallas_src>
import math

import jax
import jax.numpy as jnp
from jax.experimental import pallas as pl
from jax.experimental.pallas import tpu as pltpu


_PARAM_ORDER = ["w_in", "b_in", "w_vo", "b_vo",
                "g1", "be1", "w1", "b1",
                "g2", "be2", "w2", "b2",
                "g3", "be3", "w3", "b3"]

_MATMUL_WEIGHTS = {"w_in", "w_vo", "w1", "w2"}   # MXU operands -> bf16


# ----------------------------- Pallas kernel -----------------------------

def _critic_kernel(x_ref,
                   w_in_ref, b_in_ref,
                   w_vo_ref, b_vo_ref,
                   g1_ref, be1_ref, w1_ref, b1_ref,
                   g2_ref, be2_ref, w2_ref, b2_ref,
                   g3_ref, be3_ref, w3_ref, b3_ref,
                   out_ref):
    f32 = jnp.float32
    bf16 = jnp.bfloat16
    eps = 1e-5

    def layernorm_relu(z, g, b):
        # Single traversal: var = E[z^2] - E[z]^2 (guarded), all in f32.
        m = jnp.mean(z, axis=-1, keepdims=True)
        m2 = jnp.mean(z * z, axis=-1, keepdims=True)
        var = jnp.maximum(m2 - m * m, 0.0)
        y = (z - m) * jax.lax.rsqrt(var + eps) * g + b
        return jnp.maximum(y, 0.0)

    # In-kernel bf16 cast (VPU, free next to the matmuls) -- avoids a wrapper-side
    # cast/pad HBM round trip on the observations.
    x = x_ref[...].astype(bf16)

    # input_layer: Linear(total_obs_dim -> hidden)
    x1 = jnp.dot(x, w_in_ref[...], preferred_element_type=f32) + b_in_ref[...]

    # Length-1-sequence MultiheadAttention == out_proj(v_proj(x1)), pre-folded into
    # a single matmul (W_vo = W_v @ W_o).  Residual add stays in f32.
    attn = jnp.dot(x1.astype(bf16), w_vo_ref[...],
                   preferred_element_type=f32) + b_vo_ref[...]
    h = attn + x1

    # critic_network (Dropout(0.1) -> identity in eval mode)
    h = layernorm_relu(h, g1_ref[...], be1_ref[...])
    h = jnp.dot(h.astype(bf16), w1_ref[...], preferred_element_type=f32) + b1_ref[...]

    h = layernorm_relu(h, g2_ref[...], be2_ref[...])
    h = jnp.dot(h.astype(bf16), w2_ref[...], preferred_element_type=f32) + b2_ref[...]

    h = layernorm_relu(h, g3_ref[...], be3_ref[...])
    # Final Linear(half -> 1) as a VPU/XLU lane reduction (w3 stored as (1, half)).
    out_ref[...] = jnp.sum(h * w3_ref[...], axis=-1, keepdims=True) + b3_ref[...]


# ----------------------------- parameter setup -----------------------------

def _xavier_uniform(key, fan_in, fan_out, shape=None):
    # Matches torch.nn.init.xavier_uniform_ (gain=1).
    limit = math.sqrt(6.0 / (fan_in + fan_out))
    if shape is None:
        shape = (fan_in, fan_out)   # stored pre-transposed: (in, out)
    return jax.random.uniform(key, shape, jnp.float32, -limit, limit)


def init_params(key, total_obs_dim, hidden_dim):
    half = hidden_dim // 2
    ks = jax.random.split(key, 6)
    return dict(
        # input_layer
        w_in=_xavier_uniform(ks[0], total_obs_dim, hidden_dim),
        b_in=jnp.zeros((1, hidden_dim), jnp.float32),
        # attention: value projection (rows [2H:3H] of in_proj_weight) + out_proj
        w_v=_xavier_uniform(ks[1], hidden_dim, hidden_dim),
        b_v=jnp.zeros((1, hidden_dim), jnp.float32),
        w_o=_xavier_uniform(ks[2], hidden_dim, hidden_dim),
        b_o=jnp.zeros((1, hidden_dim), jnp.float32),
        # critic_network
        g1=jnp.ones((1, hidden_dim), jnp.float32),
        be1=jnp.zeros((1, hidden_dim), jnp.float32),
        w1=_xavier_uniform(ks[3], hidden_dim, hidden_dim),
        b1=jnp.zeros((1, hidden_dim), jnp.float32),
        g2=jnp.ones((1, hidden_dim), jnp.float32),
        be2=jnp.zeros((1, hidden_dim), jnp.float32),
        w2=_xavier_uniform(ks[4], hidden_dim, half),
        b2=jnp.zeros((1, half), jnp.float32),
        g3=jnp.ones((1, half), jnp.float32),
        be3=jnp.zeros((1, half), jnp.float32),
        # final layer stored as a (1, half) row vector (used as a lane reduction)
        w3=_xavier_uniform(ks[5], half, 1, shape=(1, half)),
        b3=jnp.zeros((1, 1), jnp.float32),
    )


def pack_params(params):
    """One-time parameter preparation for the kernel.

    Folds the length-1-attention value/output projections into a single weight
    (composed in f32, cast ONCE to bf16) and casts all MXU weights to bf16; biases
    / LayerNorm params / final row vector stay f32.
    """
    f32 = jnp.float32
    w_vo = jnp.dot(params["w_v"].astype(f32), params["w_o"].astype(f32))
    b_vo = jnp.dot(params["b_v"].astype(f32), params["w_o"].astype(f32)) + params["b_o"]
    packed = {
        "w_in": params["w_in"], "b_in": params["b_in"],
        "w_vo": w_vo, "b_vo": b_vo,
        "g1": params["g1"], "be1": params["be1"], "w1": params["w1"], "b1": params["b1"],
        "g2": params["g2"], "be2": params["be2"], "w2": params["w2"], "b2": params["b2"],
        "g3": params["g3"], "be3": params["be3"], "w3": params["w3"], "b3": params["b3"],
    }
    return {k: (v.astype(jnp.bfloat16) if k in _MATMUL_WEIGHTS else v.astype(f32))
            for k, v in packed.items()}


# ----------------------------- wrapper -----------------------------

def _round_up(a, m):
    return ((a + m - 1) // m) * m


def centralized_critic_forward(global_obs, packed, *, tile_b=512):
    squeeze_output = (global_obs.ndim == 1)
    if squeeze_output:
        global_obs = global_obs[None, :]
    global_obs = global_obs.astype(jnp.float32)

    b_in = global_obs.shape[0]
    # Only the degenerate tiny-batch case is padded (block sublane dim must be >= 8);
    # normal batches are passed through untouched (ragged last block handled by Pallas).
    if b_in < 8:
        global_obs = jnp.pad(global_obs, ((0, 8 - b_in), (0, 0)))

    B, obs_dim = global_obs.shape
    hidden = packed["w_in"].shape[1]
    half = packed["w2"].shape[1]

    # Batch tile: multiple of 8 sublanes.  Large default (512) amortizes the
    # ~0.35us per-grid-step overhead on single-TC v5e/v6e; additionally capped so
    # the grid has >= 2 steps whenever B allows, so the "parallel" batch axis can
    # be split across both TensorCores on v7x.
    tb = min(int(tile_b), _round_up(B, 8))
    if B >= 16:
        tb = min(tb, _round_up(-(-B // 2), 8))
    tb = max(8, (tb // 8) * 8)
    nb = pl.cdiv(B, tb)

    args = [global_obs] + [packed[k] for k in _PARAM_ORDER]

    # Observations blocked on the batch axis; all weights/biases full-block with a
    # constant index_map -> resident in VMEM across grid steps.
    # NOTE: for hidden_dim >= ~1024 consider pipeline_mode=pl.Buffered(1) on these
    # grid-invariant specs and an explicit vmem_limit_bytes (v5e headroom).
    in_specs = [pl.BlockSpec((tb, obs_dim), lambda i: (i, 0))]
    for k in _PARAM_ORDER:
        in_specs.append(pl.BlockSpec(packed[k].shape, lambda i: (0, 0)))
    out_specs = pl.BlockSpec((tb, 1), lambda i: (i, 0))

    flops = 2 * B * (obs_dim * hidden + hidden * hidden + hidden * half + half)
    bytes_accessed = int(sum(a.size * a.dtype.itemsize for a in args) + B * 4)
    cost = pl.CostEstimate(flops=flops, transcendentals=3 * B,
                           bytes_accessed=bytes_accessed)

    out = pl.pallas_call(
        _critic_kernel,
        out_shape=jax.ShapeDtypeStruct((B, 1), jnp.float32),
        grid=(nb,),
        in_specs=in_specs,
        out_specs=out_specs,
        compiler_params=pltpu.CompilerParams(
            dimension_semantics=("parallel",)),
        cost_estimate=cost,
    )(*args)

    if B != b_in:
        out = out[:b_in]
    if squeeze_output:
        out = out[0]
    return out


# ----------------------------- pure-JAX reference -----------------------------

def _reference(global_obs, p):
    # Mirrors the kernel numerics (bf16 matmul operands, f32 accumulation / LN),
    # operating on the same folded/packed params.
    eps = 1e-5
    f32 = jnp.float32
    bf = jnp.bfloat16

    def ln_relu(z, g, b):
        mu = jnp.mean(z, axis=-1, keepdims=True)
        var = jnp.mean((z - mu) ** 2, axis=-1, keepdims=True)
        return jnp.maximum((z - mu) / jnp.sqrt(var + eps) * g + b, 0.0)

    def dot(a, w):
        return jnp.dot(a.astype(bf), w.astype(bf), preferred_element_type=f32)

    x = global_obs.astype(f32)
    x1 = dot(x, p["w_in"]) + p["b_in"]
    h = dot(x1, p["w_vo"]) + p["b_vo"] + x1       # attn(out_proj(v_proj)) + residual
    h = ln_relu(h, p["g1"], p["be1"])
    h = dot(h, p["w1"]) + p["b1"]
    h = ln_relu(h, p["g2"], p["be2"])
    h = dot(h, p["w2"]) + p["b2"]
    h = ln_relu(h, p["g3"], p["be3"])
    return jnp.sum(h * p["w3"], axis=-1, keepdims=True) + p["b3"]


# ----------------------------- main -----------------------------

if __name__ == "__main__":
    key = jax.random.PRNGKey(0)
    k_obs, k_param, k_b = jax.random.split(key, 3)

    TOTAL_OBS_DIM = 32   # total (concatenated) observation dim
    HIDDEN_DIM = 128     # small stand-in for the default 512 (divisible by 8 heads)
    BATCH = 64

    params = init_params(k_param, TOTAL_OBS_DIM, HIDDEN_DIM)
    # PyTorch init zeroes all biases; perturb biases / LN affine params with small
    # random values so the bias and folded-b_vo paths are exercised numerically.
    bkeys = jax.random.split(k_b, len(params))
    for i, name in enumerate(sorted(params)):
        if name.startswith("b"):          # biases and LN offsets (be*)
            params[name] = 0.05 * jax.random.normal(bkeys[i], params[name].shape,
                                                    jnp.float32)
        elif name.startswith("g"):        # LN scales
            params[name] = 1.0 + 0.05 * jax.random.normal(bkeys[i], params[name].shape,
                                                          jnp.float32)

    packed = pack_params(params)          # one-time fold + bf16 cast
    global_obs = jax.random.normal(k_obs, (BATCH, TOTAL_OBS_DIM), jnp.float32)

    ref = _reference(global_obs, packed)

    # default path: tile is capped so the grid has 2 steps (v7x dual-TC friendly)
    out = jax.block_until_ready(centralized_critic_forward(global_obs, packed))
    assert out.shape == (BATCH, 1), out.shape
    assert jnp.allclose(out, ref, atol=2e-3, rtol=2e-3), "mismatch vs JAX reference"

    # explicit small tile -> 4 grid steps
    out2 = jax.block_until_ready(
        centralized_critic_forward(global_obs, packed, tile_b=16))
    assert jnp.allclose(out2, ref, atol=2e-3, rtol=2e-3), "mismatch (tiled)"

    # batch not a multiple of the tile (exercises the ragged last block, no padding)
    out3 = jax.block_until_ready(
        centralized_critic_forward(global_obs[:20], packed, tile_b=16))
    assert out3.shape == (20, 1), out3.shape
    assert jnp.allclose(out3, ref[:20], atol=2e-3, rtol=2e-3), "mismatch (ragged batch)"

    # 1-D input path (PyTorch squeeze semantics)
    out1d = jax.block_until_ready(centralized_critic_forward(global_obs[0], packed))
    assert out1d.shape == (1,), out1d.shape
    assert jnp.allclose(out1d, ref[0], atol=2e-3, rtol=2e-3), "mismatch (1-D input)"

    print("KERNEL_OK")
</pallas_src>

<mosaic_0001>
module attributes {stable_mosaic.version = 11 : i64} {
  func.func @_critic_kernel(%arg0: i32, %arg1: memref<32x32xf32, #tpu.memory_space<vmem>>, %arg2: memref<32x128xbf16, #tpu.memory_space<vmem>>, %arg3: memref<1x128xf32, #tpu.memory_space<vmem>>, %arg4: memref<128x128xbf16, #tpu.memory_space<vmem>>, %arg5: memref<1x128xf32, #tpu.memory_space<vmem>>, %arg6: memref<1x128xf32, #tpu.memory_space<vmem>>, %arg7: memref<1x128xf32, #tpu.memory_space<vmem>>, %arg8: memref<128x128xbf16, #tpu.memory_space<vmem>>, %arg9: memref<1x128xf32, #tpu.memory_space<vmem>>, %arg10: memref<1x128xf32, #tpu.memory_space<vmem>>, %arg11: memref<1x128xf32, #tpu.memory_space<vmem>>, %arg12: memref<128x64xbf16, #tpu.memory_space<vmem>>, %arg13: memref<1x64xf32, #tpu.memory_space<vmem>>, %arg14: memref<1x64xf32, #tpu.memory_space<vmem>>, %arg15: memref<1x64xf32, #tpu.memory_space<vmem>>, %arg16: memref<1x64xf32, #tpu.memory_space<vmem>>, %arg17: memref<1x1xf32, #tpu.memory_space<vmem>>, %arg18: memref<32x1xf32, #tpu.memory_space<vmem>>) attributes {dimension_semantics = [#tpu.dimension_semantics<parallel>], iteration_bounds = array<i64: 2>, scalar_prefetch = 0 : i64, scratch_operands = 0 : i64, tpu.core_type = #tpu.core_type<tc>, window_params = [{transform_indices = @transform_0, window_bounds = array<i64: 32, 32>}, {pipeline_mode = #tpu.pipeline_mode<synchronous>, transform_indices = @transform_1, window_bounds = array<i64: 32, 128>}, {pipeline_mode = #tpu.pipeline_mode<synchronous>, transform_indices = @transform_2, window_bounds = array<i64: 1, 128>}, {pipeline_mode = #tpu.pipeline_mode<synchronous>, transform_indices = @transform_3, window_bounds = array<i64: 128, 128>}, {pipeline_mode = #tpu.pipeline_mode<synchronous>, transform_indices = @transform_4, window_bounds = array<i64: 1, 128>}, {pipeline_mode = #tpu.pipeline_mode<synchronous>, transform_indices = @transform_5, window_bounds = array<i64: 1, 128>}, {pipeline_mode = #tpu.pipeline_mode<synchronous>, transform_indices = @transform_6, window_bounds = array<i64: 1, 128>}, {pipeline_mode = #tpu.pipeline_mode<synchronous>, transform_indices = @transform_7, window_bounds = array<i64: 128, 128>}, {pipeline_mode = #tpu.pipeline_mode<synchronous>, transform_indices = @transform_8, window_bounds = array<i64: 1, 128>}, {pipeline_mode = #tpu.pipeline_mode<synchronous>, transform_indices = @transform_9, window_bounds = array<i64: 1, 128>}, {pipeline_mode = #tpu.pipeline_mode<synchronous>, transform_indices = @transform_10, window_bounds = array<i64: 1, 128>}, {pipeline_mode = #tpu.pipeline_mode<synchronous>, transform_indices = @transform_11, window_bounds = array<i64: 128, 64>}, {pipeline_mode = #tpu.pipeline_mode<synchronous>, transform_indices = @transform_12, window_bounds = array<i64: 1, 64>}, {pipeline_mode = #tpu.pipeline_mode<synchronous>, transform_indices = @transform_13, window_bounds = array<i64: 1, 64>}, {pipeline_mode = #tpu.pipeline_mode<synchronous>, transform_indices = @transform_14, window_bounds = array<i64: 1, 64>}, {pipeline_mode = #tpu.pipeline_mode<synchronous>, transform_indices = @transform_15, window_bounds = array<i64: 1, 64>}, {pipeline_mode = #tpu.pipeline_mode<synchronous>, transform_indices = @transform_16, window_bounds = array<i64: 1, 1>}, {transform_indices = @transform_17, window_bounds = array<i64: 32, 1>}]} {
    %c0 = arith.constant 0 : index
    %c0_0 = arith.constant 0 : index
    %0 = vector.load %arg1[%c0, %c0_0] : memref<32x32xf32, #tpu.memory_space<vmem>>, vector<32x32xf32>
    %1 = arith.truncf %0 : vector<32x32xf32> to vector<32x32xbf16>
    %c0_1 = arith.constant 0 : index
    %c0_2 = arith.constant 0 : index
    %2 = vector.load %arg2[%c0_1, %c0_2] : memref<32x128xbf16, #tpu.memory_space<vmem>>, vector<32x128xbf16>
    %cst = arith.constant dense<0.000000e+00> : vector<32x128xf32>
    %3 = tpu.matmul %1, %2, %cst {dimension_numbers = #tpu.dot_dimension_numbers<[1], [0], [0], [1], [0, 0, 1, 1], [], []>} : vector<32x32xbf16>, vector<32x128xbf16>, vector<32x128xf32> -> vector<32x128xf32>
    %c0_3 = arith.constant 0 : index
    %c0_4 = arith.constant 0 : index
    %4 = vector.load %arg3[%c0_3, %c0_4] : memref<1x128xf32, #tpu.memory_space<vmem>>, vector<1x128xf32>
    %5 = vector.broadcast %4 : vector<1x128xf32> to vector<32x128xf32>
    %6 = arith.addf %3, %5 : vector<32x128xf32>
    %7 = arith.truncf %6 : vector<32x128xf32> to vector<32x128xbf16>
    %c0_5 = arith.constant 0 : index
    %c0_6 = arith.constant 0 : index
    %8 = vector.load %arg4[%c0_5, %c0_6] : memref<128x128xbf16, #tpu.memory_space<vmem>>, vector<128x128xbf16>
    %cst_7 = arith.constant dense<0.000000e+00> : vector<32x128xf32>
    %9 = tpu.matmul %7, %8, %cst_7 {dimension_numbers = #tpu.dot_dimension_numbers<[1], [0], [0], [1], [0, 0, 1, 1], [], []>} : vector<32x128xbf16>, vector<128x128xbf16>, vector<32x128xf32> -> vector<32x128xf32>
    %c0_8 = arith.constant 0 : index
    %c0_9 = arith.constant 0 : index
    %10 = vector.load %arg5[%c0_8, %c0_9] : memref<1x128xf32, #tpu.memory_space<vmem>>, vector<1x128xf32>
    %11 = vector.broadcast %10 : vector<1x128xf32> to vector<32x128xf32>
    %12 = arith.addf %9, %11 : vector<32x128xf32>
    %13 = arith.addf %12, %6 : vector<32x128xf32>
    %c0_10 = arith.constant 0 : index
    %c0_11 = arith.constant 0 : index
    %14 = vector.load %arg6[%c0_10, %c0_11] : memref<1x128xf32, #tpu.memory_space<vmem>>, vector<1x128xf32>
    %c0_12 = arith.constant 0 : index
    %c0_13 = arith.constant 0 : index
    %15 = vector.load %arg7[%c0_12, %c0_13] : memref<1x128xf32, #tpu.memory_space<vmem>>, vector<1x128xf32>
    %cst_14 = arith.constant dense<0.000000e+00> : vector<32xf32>
    %16 = vector.multi_reduction <add>, %13, %cst_14 [1] : vector<32x128xf32> to vector<32xf32>
    %17 = vector.shape_cast %16 : vector<32xf32> to vector<32x1xf32>
    %cst_15 = arith.constant 1.280000e+02 : f32
    %18 = vector.broadcast %cst_15 : f32 to vector<32x1xf32>
    %19 = arith.divf %17, %18 : vector<32x1xf32>
    %20 = arith.mulf %13, %13 : vector<32x128xf32>
    %cst_16 = arith.constant dense<0.000000e+00> : vector<32xf32>
    %21 = vector.multi_reduction <add>, %20, %cst_16 [1] : vector<32x128xf32> to vector<32xf32>
    %22 = vector.shape_cast %21 : vector<32xf32> to vector<32x1xf32>
    %cst_17 = arith.constant 1.280000e+02 : f32
    %23 = vector.broadcast %cst_17 : f32 to vector<32x1xf32>
    %24 = arith.divf %22, %23 : vector<32x1xf32>
    %25 = arith.mulf %19, %19 : vector<32x1xf32>
    %26 = arith.subf %24, %25 : vector<32x1xf32>
    %cst_18 = arith.constant 0.000000e+00 : f32
    %27 = vector.broadcast %cst_18 : f32 to vector<32x1xf32>
    %28 = arith.maximumf %26, %27 : vector<32x1xf32>
    %29 = vector.broadcast %19 : vector<32x1xf32> to vector<32x128xf32>
    %30 = arith.subf %13, %29 : vector<32x128xf32>
    %cst_19 = arith.constant 9.99999974E-6 : f32
    %31 = vector.broadcast %cst_19 : f32 to vector<32x1xf32>
    %32 = arith.addf %28, %31 : vector<32x1xf32>
    %33 = math.rsqrt %32 : vector<32x1xf32>
    %34 = vector.broadcast %33 : vector<32x1xf32> to vector<32x128xf32>
    %35 = arith.mulf %30, %34 : vector<32x128xf32>
    %36 = vector.broadcast %14 : vector<1x128xf32> to vector<32x128xf32>
    %37 = arith.mulf %35, %36 : vector<32x128xf32>
    %38 = vector.broadcast %15 : vector<1x128xf32> to vector<32x128xf32>
    %39 = arith.addf %37, %38 : vector<32x128xf32>
    %cst_20 = arith.constant 0.000000e+00 : f32
    %40 = vector.broadcast %cst_20 : f32 to vector<32x128xf32>
    %41 = arith.maximumf %39, %40 : vector<32x128xf32>
    %42 = arith.truncf %41 : vector<32x128xf32> to vector<32x128xbf16>
    %c0_21 = arith.constant 0 : index
    %c0_22 = arith.constant 0 : index
    %43 = vector.load %arg8[%c0_21, %c0_22] : memref<128x128xbf16, #tpu.memory_space<vmem>>, vector<128x128xbf16>
    %cst_23 = arith.constant dense<0.000000e+00> : vector<32x128xf32>
    %44 = tpu.matmul %42, %43, %cst_23 {dimension_numbers = #tpu.dot_dimension_numbers<[1], [0], [0], [1], [0, 0, 1, 1], [], []>} : vector<32x128xbf16>, vector<128x128xbf16>, vector<32x128xf32> -> vector<32x128xf32>
    %c0_24 = arith.constant 0 : index
    %c0_25 = arith.constant 0 : index
    %45 = vector.load %arg9[%c0_24, %c0_25] : memref<1x128xf32, #tpu.memory_space<vmem>>, vector<1x128xf32>
    %46 = vector.broadcast %45 : vector<1x128xf32> to vector<32x128xf32>
    %47 = arith.addf %44, %46 : vector<32x128xf32>
    %c0_26 = arith.constant 0 : index
    %c0_27 = arith.constant 0 : index
    %48 = vector.load %arg10[%c0_26, %c0_27] : memref<1x128xf32, #tpu.memory_space<vmem>>, vector<1x128xf32>
    %c0_28 = arith.constant 0 : index
    %c0_29 = arith.constant 0 : index
    %49 = vector.load %arg11[%c0_28, %c0_29] : memref<1x128xf32, #tpu.memory_space<vmem>>, vector<1x128xf32>
    %cst_30 = arith.constant dense<0.000000e+00> : vector<32xf32>
    %50 = vector.multi_reduction <add>, %47, %cst_30 [1] : vector<32x128xf32> to vector<32xf32>
    %51 = vector.shape_cast %50 : vector<32xf32> to vector<32x1xf32>
    %cst_31 = arith.constant 1.280000e+02 : f32
    %52 = vector.broadcast %cst_31 : f32 to vector<32x1xf32>
    %53 = arith.divf %51, %52 : vector<32x1xf32>
    %54 = arith.mulf %47, %47 : vector<32x128xf32>
    %cst_32 = arith.constant dense<0.000000e+00> : vector<32xf32>
    %55 = vector.multi_reduction <add>, %54, %cst_32 [1] : vector<32x128xf32> to vector<32xf32>
    %56 = vector.shape_cast %55 : vector<32xf32> to vector<32x1xf32>
    %cst_33 = arith.constant 1.280000e+02 : f32
    %57 = vector.broadcast %cst_33 : f32 to vector<32x1xf32>
    %58 = arith.divf %56, %57 : vector<32x1xf32>
    %59 = arith.mulf %53, %53 : vector<32x1xf32>
    %60 = arith.subf %58, %59 : vector<32x1xf32>
    %cst_34 = arith.constant 0.000000e+00 : f32
    %61 = vector.broadcast %cst_34 : f32 to vector<32x1xf32>
    %62 = arith.maximumf %60, %61 : vector<32x1xf32>
    %63 = vector.broadcast %53 : vector<32x1xf32> to vector<32x128xf32>
    %64 = arith.subf %47, %63 : vector<32x128xf32>
    %cst_35 = arith.constant 9.99999974E-6 : f32
    %65 = vector.broadcast %cst_35 : f32 to vector<32x1xf32>
    %66 = arith.addf %62, %65 : vector<32x1xf32>
    %67 = math.rsqrt %66 : vector<32x1xf32>
    %68 = vector.broadcast %67 : vector<32x1xf32> to vector<32x128xf32>
    %69 = arith.mulf %64, %68 : vector<32x128xf32>
    %70 = vector.broadcast %48 : vector<1x128xf32> to vector<32x128xf32>
    %71 = arith.mulf %69, %70 : vector<32x128xf32>
    %72 = vector.broadcast %49 : vector<1x128xf32> to vector<32x128xf32>
    %73 = arith.addf %71, %72 : vector<32x128xf32>
    %cst_36 = arith.constant 0.000000e+00 : f32
    %74 = vector.broadcast %cst_36 : f32 to vector<32x128xf32>
    %75 = arith.maximumf %73, %74 : vector<32x128xf32>
    %76 = arith.truncf %75 : vector<32x128xf32> to vector<32x128xbf16>
    %c0_37 = arith.constant 0 : index
    %c0_38 = arith.constant 0 : index
    %77 = vector.load %arg12[%c0_37, %c0_38] : memref<128x64xbf16, #tpu.memory_space<vmem>>, vector<128x64xbf16>
    %cst_39 = arith.constant dense<0.000000e+00> : vector<32x64xf32>
    %78 = tpu.matmul %76, %77, %cst_39 {dimension_numbers = #tpu.dot_dimension_numbers<[1], [0], [0], [1], [0, 0, 1, 1], [], []>} : vector<32x128xbf16>, vector<128x64xbf16>, vector<32x64xf32> -> vector<32x64xf32>
    %c0_40 = arith.constant 0 : index
    %c0_41 = arith.constant 0 : index
    %79 = vector.load %arg13[%c0_40, %c0_41] : memref<1x64xf32, #tpu.memory_space<vmem>>, vector<1x64xf32>
    %80 = vector.broadcast %79 : vector<1x64xf32> to vector<32x64xf32>
    %81 = arith.addf %78, %80 : vector<32x64xf32>
    %c0_42 = arith.constant 0 : index
    %c0_43 = arith.constant 0 : index
    %82 = vector.load %arg14[%c0_42, %c0_43] : memref<1x64xf32, #tpu.memory_space<vmem>>, vector<1x64xf32>
    %c0_44 = arith.constant 0 : index
    %c0_45 = arith.constant 0 : index
    %83 = vector.load %arg15[%c0_44, %c0_45] : memref<1x64xf32, #tpu.memory_space<vmem>>, vector<1x64xf32>
    %cst_46 = arith.constant dense<0.000000e+00> : vector<32xf32>
    %84 = vector.multi_reduction <add>, %81, %cst_46 [1] : vector<32x64xf32> to vector<32xf32>
    %85 = vector.shape_cast %84 : vector<32xf32> to vector<32x1xf32>
    %cst_47 = arith.constant 6.400000e+01 : f32
    %86 = vector.broadcast %cst_47 : f32 to vector<32x1xf32>
    %87 = arith.divf %85, %86 : vector<32x1xf32>
    %88 = arith.mulf %81, %81 : vector<32x64xf32>
    %cst_48 = arith.constant dense<0.000000e+00> : vector<32xf32>
    %89 = vector.multi_reduction <add>, %88, %cst_48 [1] : vector<32x64xf32> to vector<32xf32>
    %90 = vector.shape_cast %89 : vector<32xf32> to vector<32x1xf32>
    %cst_49 = arith.constant 6.400000e+01 : f32
    %91 = vector.broadcast %cst_49 : f32 to vector<32x1xf32>
    %92 = arith.divf %90, %91 : vector<32x1xf32>
    %93 = arith.mulf %87, %87 : vector<32x1xf32>
    %94 = arith.subf %92, %93 : vector<32x1xf32>
    %cst_50 = arith.constant 0.000000e+00 : f32
    %95 = vector.broadcast %cst_50 : f32 to vector<32x1xf32>
    %96 = arith.maximumf %94, %95 : vector<32x1xf32>
    %97 = vector.broadcast %87 : vector<32x1xf32> to vector<32x64xf32>
    %98 = arith.subf %81, %97 : vector<32x64xf32>
    %cst_51 = arith.constant 9.99999974E-6 : f32
    %99 = vector.broadcast %cst_51 : f32 to vector<32x1xf32>
    %100 = arith.addf %96, %99 : vector<32x1xf32>
    %101 = math.rsqrt %100 : vector<32x1xf32>
    %102 = vector.broadcast %101 : vector<32x1xf32> to vector<32x64xf32>
    %103 = arith.mulf %98, %102 : vector<32x64xf32>
    %104 = vector.broadcast %82 : vector<1x64xf32> to vector<32x64xf32>
    %105 = arith.mulf %103, %104 : vector<32x64xf32>
    %106 = vector.broadcast %83 : vector<1x64xf32> to vector<32x64xf32>
    %107 = arith.addf %105, %106 : vector<32x64xf32>
    %cst_52 = arith.constant 0.000000e+00 : f32
    %108 = vector.broadcast %cst_52 : f32 to vector<32x64xf32>
    %109 = arith.maximumf %107, %108 : vector<32x64xf32>
    %c0_53 = arith.constant 0 : index
    %c0_54 = arith.constant 0 : index
    %110 = vector.load %arg16[%c0_53, %c0_54] : memref<1x64xf32, #tpu.memory_space<vmem>>, vector<1x64xf32>
    %111 = vector.broadcast %110 : vector<1x64xf32> to vector<32x64xf32>
    %112 = arith.mulf %109, %111 : vector<32x64xf32>
    %cst_55 = arith.constant dense<0.000000e+00> : vector<32xf32>
    %113 = vector.multi_reduction <add>, %112, %cst_55 [1] : vector<32x64xf32> to vector<32xf32>
    %114 = vector.shape_cast %113 : vector<32xf32> to vector<32x1xf32>
    %c0_56 = arith.constant 0 : index
    %c0_57 = arith.constant 0 : index
    %115 = vector.load %arg17[%c0_56, %c0_57] : memref<1x1xf32, #tpu.memory_space<vmem>>, vector<1x1xf32>
    %116 = vector.broadcast %115 : vector<1x1xf32> to vector<32x1xf32>
    %117 = arith.addf %114, %116 : vector<32x1xf32>
    %c0_58 = arith.constant 0 : index
    %c0_59 = arith.constant 0 : index
    %118 = vector.load %arg18[%c0_58, %c0_59] : memref<32x1xf32, #tpu.memory_space<vmem>>, vector<32x1xf32>
    tpu.vector_store %arg18[%c0_58, %c0_59], %117 {strides = array<i32>} : memref<32x1xf32, #tpu.memory_space<vmem>>, vector<32x1xf32>,
    return
  }
  func.func @transform_0(%arg0: i32) -> (i32, i32) {
    %c0_i32 = arith.constant 0 : i32
    %c0_i32_0 = arith.constant 0 : i32
    return %arg0, %c0_i32 : i32, i32
  }
  func.func @transform_1(%arg0: i32) -> (i32, i32) {
    %c0_i32 = arith.constant 0 : i32
    %c0_i32_0 = arith.constant 0 : i32
    %c0_i32_1 = arith.constant 0 : i32
    return %c0_i32, %c0_i32_0 : i32, i32
  }
  func.func @transform_2(%arg0: i32) -> (i32, i32) {
    %c0_i32 = arith.constant 0 : i32
    %c0_i32_0 = arith.constant 0 : i32
    %c0_i32_1 = arith.constant 0 : i32
    return %c0_i32, %c0_i32_0 : i32, i32
  }
  func.func @transform_3(%arg0: i32) -> (i32, i32) {
    %c0_i32 = arith.constant 0 : i32
    %c0_i32_0 = arith.constant 0 : i32
    %c0_i32_1 = arith.constant 0 : i32
    return %c0_i32, %c0_i32_0 : i32, i32
  }
  func.func @transform_4(%arg0: i32) -> (i32, i32) {
    %c0_i32 = arith.constant 0 : i32
    %c0_i32_0 = arith.constant 0 : i32
    %c0_i32_1 = arith.constant 0 : i32
    return %c0_i32, %c0_i32_0 : i32, i32
  }
  func.func @transform_5(%arg0: i32) -> (i32, i32) {
    %c0_i32 = arith.constant 0 : i32
    %c0_i32_0 = arith.constant 0 : i32
    %c0_i32_1 = arith.constant 0 : i32
    return %c0_i32, %c0_i32_0 : i32, i32
  }
  func.func @transform_6(%arg0: i32) -> (i32, i32) {
    %c0_i32 = arith.constant 0 : i32
    %c0_i32_0 = arith.constant 0 : i32
    %c0_i32_1 = arith.constant 0 : i32
    return %c0_i32, %c0_i32_0 : i32, i32
  }
  func.func @transform_7(%arg0: i32) -> (i32, i32) {
    %c0_i32 = arith.constant 0 : i32
    %c0_i32_0 = arith.constant 0 : i32
    %c0_i32_1 = arith.constant 0 : i32
    return %c0_i32, %c0_i32_0 : i32, i32
  }
  func.func @transform_8(%arg0: i32) -> (i32, i32) {
    %c0_i32 = arith.constant 0 : i32
    %c0_i32_0 = arith.constant 0 : i32
    %c0_i32_1 = arith.constant 0 : i32
    return %c0_i32, %c0_i32_0 : i32, i32
  }
  func.func @transform_9(%arg0: i32) -> (i32, i32) {
    %c0_i32 = arith.constant 0 : i32
    %c0_i32_0 = arith.constant 0 : i32
    %c0_i32_1 = arith.constant 0 : i32
    return %c0_i32, %c0_i32_0 : i32, i32
  }
  func.func @transform_10(%arg0: i32) -> (i32, i32) {
    %c0_i32 = arith.constant 0 : i32
    %c0_i32_0 = arith.constant 0 : i32
    %c0_i32_1 = arith.constant 0 : i32
    return %c0_i32, %c0_i32_0 : i32, i32
  }
  func.func @transform_11(%arg0: i32) -> (i32, i32) {
    %c0_i32 = arith.constant 0 : i32
    %c0_i32_0 = arith.constant 0 : i32
    %c0_i32_1 = arith.constant 0 : i32
    return %c0_i32, %c0_i32_0 : i32, i32
  }
  func.func @transform_12(%arg0: i32) -> (i32, i32) {
    %c0_i32 = arith.constant 0 : i32
    %c0_i32_0 = arith.constant 0 : i32
    %c0_i32_1 = arith.constant 0 : i32
    return %c0_i32, %c0_i32_0 : i32, i32
  }
  func.func @transform_13(%arg0: i32) -> (i32, i32) {
    %c0_i32 = arith.constant 0 : i32
    %c0_i32_0 = arith.constant 0 : i32
    %c0_i32_1 = arith.constant 0 : i32
    return %c0_i32, %c0_i32_0 : i32, i32
  }
  func.func @transform_14(%arg0: i32) -> (i32, i32) {
    %c0_i32 = arith.constant 0 : i32
    %c0_i32_0 = arith.constant 0 : i32
    %c0_i32_1 = arith.constant 0 : i32
    return %c0_i32, %c0_i32_0 : i32, i32
  }
  func.func @transform_15(%arg0: i32) -> (i32, i32) {
    %c0_i32 = arith.constant 0 : i32
    %c0_i32_0 = arith.constant 0 : i32
    %c0_i32_1 = arith.constant 0 : i32
    return %c0_i32, %c0_i32_0 : i32, i32
  }
  func.func @transform_16(%arg0: i32) -> (i32, i32) {
    %c0_i32 = arith.constant 0 : i32
    %c0_i32_0 = arith.constant 0 : i32
    %c0_i32_1 = arith.constant 0 : i32
    return %c0_i32, %c0_i32_0 : i32, i32
  }
  func.func @transform_17(%arg0: i32) -> (i32, i32) {
    %c0_i32 = arith.constant 0 : i32
    %c0_i32_0 = arith.constant 0 : i32
    return %arg0, %c0_i32 : i32, i32
  }
}

</mosaic_0001>

<llo_original>
// kernel: tpu_custom_call.1
$region0: #{tpu_custom_call.1}
  #allocation0 [shape = 'u32[]', space=smem, size = 0x4, offset = 0x4, fixed_abs, tag = 'smem constant byte address 0x4 - core index']
  #allocation1 [shape = 'u32[72,128]{1,0:T(1,128)}', space=vmem, size = 0x9000, scoped, tag = 'internal scratch']
  #allocation2 [shape = 'f32[1,1]{1,0:T(1,128)S(1)}', space=vmem, size = 0x200, scoped, tag = 'scoped memory for tpu_custom_call.1']
  %s0 = inlined_call_operand.vmem [shape: f32[64,32], index: 0, kind: input, shape index: {}]
  %s1 = inlined_call_operand.vmem [shape: bf16[32,128], index: 1, kind: input, shape index: {}]
  %s2 = inlined_call_operand.vmem [shape: f32[1,128], index: 2, kind: input, shape index: {}]
  %s3 = inlined_call_operand.vmem [shape: bf16[128,128], index: 3, kind: input, shape index: {}]
  %s4 = inlined_call_operand.vmem [shape: f32[1,128], index: 4, kind: input, shape index: {}]
  %s5 = inlined_call_operand.vmem [shape: f32[1,128], index: 5, kind: input, shape index: {}]
  %s6 = inlined_call_operand.vmem [shape: f32[1,128], index: 6, kind: input, shape index: {}]
  %s7 = inlined_call_operand.vmem [shape: bf16[128,128], index: 7, kind: input, shape index: {}]
  %s8 = inlined_call_operand.vmem [shape: f32[1,128], index: 8, kind: input, shape index: {}]
  %s9 = inlined_call_operand.vmem [shape: f32[1,128], index: 9, kind: input, shape index: {}]
  %s10 = inlined_call_operand.vmem [shape: f32[1,128], index: 10, kind: input, shape index: {}]
  %s11 = inlined_call_operand.vmem [shape: bf16[128,64], index: 11, kind: input, shape index: {}]
  %s12 = inlined_call_operand.vmem [shape: f32[1,64], index: 12, kind: input, shape index: {}]
  %s13 = inlined_call_operand.vmem [shape: f32[1,64], index: 13, kind: input, shape index: {}]
  %s14 = inlined_call_operand.vmem [shape: f32[1,64], index: 14, kind: input, shape index: {}]
  %s15 = inlined_call_operand.vmem [shape: f32[1,64], index: 15, kind: input, shape index: {}]
  %s16 = inlined_call_operand.<no memory space> [shape: f32[1,1], index: 16, kind: input, shape index: {}]
  %s17 = inlined_call_operand.vmem [shape: f32[64,1], index: 17, kind: output, shape index: {}]
  %s18 = sld [smem:[#allocation0]]
  $region101: #{tpu_custom_call.1} parent=0
    _
  %s20 = ssub.s32 1, %s18
  %s21 = scalar_select 0, %s20, %s18
  %v22 = vstv %s16
  %23 = vst [vmem:[#allocation2] sm:$0x1] %v22
  loop: start=0, step=1, limit=4
  $region2: #{tpu_custom_call.1} parent=0 // loop_pre_header
    _
  $region3: #{tpu_custom_call.1} parent=0 // loop_header
    %s25 = sphi 0, %s29
    %p26 = scmp.ge.s32.totalorder %s25, 4
    %s35 = sphi 0, %s37
    %s38 = sphi 0, %s35
    %s39 = sphi 0, %s38
    %s55 = sphi 0, %s39
    %s59 = sphi 0, %s59
    %s61 = sphi 0, %s59
    %s62 = sphi 0, %s61
    %s76 = sphi 0, %s62
    %s80 = sphi 0, %s80
    %s82 = sphi 0, %s80
    %s83 = sphi 0, %s82
    %s97 = sphi 0, %s83
    %s101 = sphi 0, %s101
    %s103 = sphi 0, %s101
    %s104 = sphi 0, %s103
    %s118 = sphi 0, %s104
    %s122 = sphi 0, %s122
    %s124 = sphi 0, %s122
    %s125 = sphi 0, %s124
    %s139 = sphi 0, %s125
    %s143 = sphi 0, %s143
    %s145 = sphi 0, %s143
    %s146 = sphi 0, %s145
    %s160 = sphi 0, %s146
    %s164 = sphi 0, %s164
    %s166 = sphi 0, %s164
    %s167 = sphi 0, %s166
    %s181 = sphi 0, %s167
    %s185 = sphi 0, %s185
    %s187 = sphi 0, %s185
    %s188 = sphi 0, %s187
    %s202 = sphi 0, %s188
    %s206 = sphi 0, %s206
    %s208 = sphi 0, %s206
    %s209 = sphi 0, %s208
    %s223 = sphi 0, %s209
    %s227 = sphi 0, %s227
    %s229 = sphi 0, %s227
    %s230 = sphi 0, %s229
    %s244 = sphi 0, %s230
    %s248 = sphi 0, %s248
    %s250 = sphi 0, %s248
    %s251 = sphi 0, %s250
    %s265 = sphi 0, %s251
    %s269 = sphi 0, %s269
    %s271 = sphi 0, %s269
    %s272 = sphi 0, %s271
    %s286 = sphi 0, %s272
    %s290 = sphi 0, %s290
    %s292 = sphi 0, %s290
    %s293 = sphi 0, %s292
    %s307 = sphi 0, %s293
    %s311 = sphi 0, %s311
    %s313 = sphi 0, %s311
    %s314 = sphi 0, %s313
    %s328 = sphi 0, %s314
    %s332 = sphi 0, %s332
    %s334 = sphi 0, %s332
    %s335 = sphi 0, %s334
    %s349 = sphi 0, %s335
    %s353 = sphi 0, %s353
    %s355 = sphi 0, %s353
    %s356 = sphi 0, %s355
    %s370 = sphi 0, %s356
    %s374 = sphi 0, %s374
    %s376 = sphi 0, %s374
    %s377 = sphi 0, %s376
    %s391 = sphi 0, %s377
    %s397 = sphi 0, %s399
    %s400 = sphi 0, %s397
    %s401 = sphi 0, %s400
    %s417 = sphi 0, %s401
  $region4: #{tpu_custom_call.1} parent=0 // loop_header_branch
    %28 = sbr.rel (%p26) target = $region8
  $region5: #{tpu_custom_call.1} parent=0 // loop_body
    %s30 = ssub.s32 %s25, 1
    %s31 = ssub.s32 %s25, 2
    %s32 = sadd.s32 %s25, 1
    %s33 = ssub.s32 %s25, %s32
    %p34 = scmp.eq.s32.totalorder %s33, 0
    %s36 = sadd.s32 %s35, 1
    %s37 = scalar_select %p34, %s35, %s36
    %p40 = pneg %p34
    %p41 = scmp.eq.s32.totalorder %s25, 1
    %p42 = por %p40, %p41
    %p43 = scmp.ne.s32.totalorder %s35, %s38
    %p44 = scmp.eq.s32.totalorder %s25, 0
    %p45 = por %p43, %p44
    %p46 = scmp.ne.s32.totalorder %s35, %s38
    %p47 = scmp.eq.s32.totalorder %s30, 1
    %p48 = por %p46, %p47
    %p49 = scmp.ne.s32.totalorder %s38, %s39
    %p50 = scmp.eq.s32.totalorder %s30, 0
    %p51 = por %p49, %p50
    %p52 = scmp.ne.s32.totalorder %s38, %s39
    %p53 = scmp.eq.s32.totalorder %s31, 1
    %p54 = por %p52, %p53
    %p56 = scmp.ne.s32.totalorder %s39, %s55
    %p57 = scmp.eq.s32.totalorder %s31, 0
    %p58 = por %p56, %p57
    %s60 = sadd.s32 %s59, 1
    %p63 = scmp.eq.s32.totalorder %s25, 1
    %p64 = scmp.ne.s32.totalorder %s59, %s61
    %p65 = scmp.eq.s32.totalorder %s25, 0
    %p66 = por %p64, %p65
    %p67 = scmp.ne.s32.totalorder %s59, %s61
    %p68 = scmp.eq.s32.totalorder %s30, 1
    %p69 = por %p67, %p68
    %p70 = scmp.ne.s32.totalorder %s61, %s62
    %p71 = scmp.eq.s32.totalorder %s30, 0
    %p72 = por %p70, %p71
    %p73 = scmp.ne.s32.totalorder %s61, %s62
    %p74 = scmp.eq.s32.totalorder %s31, 1
    %p75 = por %p73, %p74
    %p77 = scmp.ne.s32.totalorder %s62, %s76
    %p78 = scmp.eq.s32.totalorder %s31, 0
    %p79 = por %p77, %p78
    %s81 = sadd.s32 %s80, 1
    %p84 = scmp.eq.s32.totalorder %s25, 1
    %p85 = scmp.ne.s32.totalorder %s80, %s82
    %p86 = scmp.eq.s32.totalorder %s25, 0
    %p87 = por %p85, %p86
    %p88 = scmp.ne.s32.totalorder %s80, %s82
    %p89 = scmp.eq.s32.totalorder %s30, 1
    %p90 = por %p88, %p89
    %p91 = scmp.ne.s32.totalorder %s82, %s83
    %p92 = scmp.eq.s32.totalorder %s30, 0
    %p93 = por %p91, %p92
    %p94 = scmp.ne.s32.totalorder %s82, %s83
    %p95 = scmp.eq.s32.totalorder %s31, 1
    %p96 = por %p94, %p95
    %p98 = scmp.ne.s32.totalorder %s83, %s97
    %p99 = scmp.eq.s32.totalorder %s31, 0
    %p100 = por %p98, %p99
    %s102 = sadd.s32 %s101, 1
    %p105 = scmp.eq.s32.totalorder %s25, 1
    %p106 = scmp.ne.s32.totalorder %s101, %s103
    %p107 = scmp.eq.s32.totalorder %s25, 0
    %p108 = por %p106, %p107
    %p109 = scmp.ne.s32.totalorder %s101, %s103
    %p110 = scmp.eq.s32.totalorder %s30, 1
    %p111 = por %p109, %p110
    %p112 = scmp.ne.s32.totalorder %s103, %s104
    %p113 = scmp.eq.s32.totalorder %s30, 0
    %p114 = por %p112, %p113
    %p115 = scmp.ne.s32.totalorder %s103, %s104
    %p116 = scmp.eq.s32.totalorder %s31, 1
    %p117 = por %p115, %p116
    %p119 = scmp.ne.s32.totalorder %s104, %s118
    %p120 = scmp.eq.s32.totalorder %s31, 0
    %p121 = por %p119, %p120
    %s123 = sadd.s32 %s122, 1
    %p126 = scmp.eq.s32.totalorder %s25, 1
    %p127 = scmp.ne.s32.totalorder %s122, %s124
    %p128 = scmp.eq.s32.totalorder %s25, 0
    %p129 = por %p127, %p128
    %p130 = scmp.ne.s32.totalorder %s122, %s124
    %p131 = scmp.eq.s32.totalorder %s30, 1
    %p132 = por %p130, %p131
    %p133 = scmp.ne.s32.totalorder %s124, %s125
    %p134 = scmp.eq.s32.totalorder %s30, 0
    %p135 = por %p133, %p134
    %p136 = scmp.ne.s32.totalorder %s124, %s125
    %p137 = scmp.eq.s32.totalorder %s31, 1
    %p138 = por %p136, %p137
    %p140 = scmp.ne.s32.totalorder %s125, %s139
    %p141 = scmp.eq.s32.totalorder %s31, 0
    %p142 = por %p140, %p141
    %s144 = sadd.s32 %s143, 1
    %p147 = scmp.eq.s32.totalorder %s25, 1
    %p148 = scmp.ne.s32.totalorder %s143, %s145
    %p149 = scmp.eq.s32.totalorder %s25, 0
    %p150 = por %p148, %p149
    %p151 = scmp.ne.s32.totalorder %s143, %s145
    %p152 = scmp.eq.s32.totalorder %s30, 1
    %p153 = por %p151, %p152
    %p154 = scmp.ne.s32.totalorder %s145, %s146
    %p155 = scmp.eq.s32.totalorder %s30, 0
    %p156 = por %p154, %p155
    %p157 = scmp.ne.s32.totalorder %s145, %s146
    %p158 = scmp.eq.s32.totalorder %s31, 1
    %p159 = por %p157, %p158
    %p161 = scmp.ne.s32.totalorder %s146, %s160
    %p162 = scmp.eq.s32.totalorder %s31, 0
    %p163 = por %p161, %p162
    %s165 = sadd.s32 %s164, 1
    %p168 = scmp.eq.s32.totalorder %s25, 1
    %p169 = scmp.ne.s32.totalorder %s164, %s166
    %p170 = scmp.eq.s32.totalorder %s25, 0
    %p171 = por %p169, %p170
    %p172 = scmp.ne.s32.totalorder %s164, %s166
    %p173 = scmp.eq.s32.totalorder %s30, 1
    %p174 = por %p172, %p173
    %p175 = scmp.ne.s32.totalorder %s166, %s167
    %p176 = scmp.eq.s32.totalorder %s30, 0
    %p177 = por %p175, %p176
    %p178 = scmp.ne.s32.totalorder %s166, %s167
    %p179 = scmp.eq.s32.totalorder %s31, 1
    %p180 = por %p178, %p179
    %p182 = scmp.ne.s32.totalorder %s167, %s181
    %p183 = scmp.eq.s32.totalorder %s31, 0
    %p184 = por %p182, %p183
    %s186 = sadd.s32 %s185, 1
    %p189 = scmp.eq.s32.totalorder %s25, 1
    %p190 = scmp.ne.s32.totalorder %s185, %s187
    %p191 = scmp.eq.s32.totalorder %s25, 0
    %p192 = por %p190, %p191
    %p193 = scmp.ne.s32.totalorder %s185, %s187
    %p194 = scmp.eq.s32.totalorder %s30, 1
    %p195 = por %p193, %p194
    %p196 = scmp.ne.s32.totalorder %s187, %s188
    %p197 = scmp.eq.s32.totalorder %s30, 0
    %p198 = por %p196, %p197
    %p199 = scmp.ne.s32.totalorder %s187, %s188
    %p200 = scmp.eq.s32.totalorder %s31, 1
    %p201 = por %p199, %p200
    %p203 = scmp.ne.s32.totalorder %s188, %s202
    %p204 = scmp.eq.s32.totalorder %s31, 0
    %p205 = por %p203, %p204
    %s207 = sadd.s32 %s206, 1
    %p210 = scmp.eq.s32.totalorder %s25, 1
    %p211 = scmp.ne.s32.totalorder %s206, %s208
    %p212 = scmp.eq.s32.totalorder %s25, 0
    %p213 = por %p211, %p212
    %p214 = scmp.ne.s32.totalorder %s206, %s208
    %p215 = scmp.eq.s32.totalorder %s30, 1
    %p216 = por %p214, %p215
    %p217 = scmp.ne.s32.totalorder %s208, %s209
    %p218 = scmp.eq.s32.totalorder %s30, 0
    %p219 = por %p217, %p218
    %p220 = scmp.ne.s32.totalorder %s208, %s209
    %p221 = scmp.eq.s32.totalorder %s31, 1
    %p222 = por %p220, %p221
    %p224 = scmp.ne.s32.totalorder %s209, %s223
    %p225 = scmp.eq.s32.totalorder %s31, 0
    %p226 = por %p224, %p225
    %s228 = sadd.s32 %s227, 1
    %p231 = scmp.eq.s32.totalorder %s25, 1
    %p232 = scmp.ne.s32.totalorder %s227, %s229
    %p233 = scmp.eq.s32.totalorder %s25, 0
    %p234 = por %p232, %p233
    %p235 = scmp.ne.s32.totalorder %s227, %s229
    %p236 = scmp.eq.s32.totalorder %s30, 1
    %p237 = por %p235, %p236
    %p238 = scmp.ne.s32.totalorder %s229, %s230
    %p239 = scmp.eq.s32.totalorder %s30, 0
    %p240 = por %p238, %p239
    %p241 = scmp.ne.s32.totalorder %s229, %s230
    %p242 = scmp.eq.s32.totalorder %s31, 1
    %p243 = por %p241, %p242
    %p245 = scmp.ne.s32.totalorder %s230, %s244
    %p246 = scmp.eq.s32.totalorder %s31, 0
    %p247 = por %p245, %p246
    %s249 = sadd.s32 %s248, 1
    %p252 = scmp.eq.s32.totalorder %s25, 1
    %p253 = scmp.ne.s32.totalorder %s248, %s250
    %p254 = scmp.eq.s32.totalorder %s25, 0
    %p255 = por %p253, %p254
    %p256 = scmp.ne.s32.totalorder %s248, %s250
    %p257 = scmp.eq.s32.totalorder %s30, 1
    %p258 = por %p256, %p257
    %p259 = scmp.ne.s32.totalorder %s250, %s251
    %p260 = scmp.eq.s32.totalorder %s30, 0
    %p261 = por %p259, %p260
    %p262 = scmp.ne.s32.totalorder %s250, %s251
    %p263 = scmp.eq.s32.totalorder %s31, 1
    %p264 = por %p262, %p263
    %p266 = scmp.ne.s32.totalorder %s251, %s265
    %p267 = scmp.eq.s32.totalorder %s31, 0
    %p268 = por %p266, %p267
    %s270 = sadd.s32 %s269, 1
    %p273 = scmp.eq.s32.totalorder %s25, 1
    %p274 = scmp.ne.s32.totalorder %s269, %s271
    %p275 = scmp.eq.s32.totalorder %s25, 0
    %p276 = por %p274, %p275
    %p277 = scmp.ne.s32.totalorder %s269, %s271
    %p278 = scmp.eq.s32.totalorder %s30, 1
    %p279 = por %p277, %p278
    %p280 = scmp.ne.s32.totalorder %s271, %s272
    %p281 = scmp.eq.s32.totalorder %s30, 0
    %p282 = por %p280, %p281
    %p283 = scmp.ne.s32.totalorder %s271, %s272
    %p284 = scmp.eq.s32.totalorder %s31, 1
    %p285 = por %p283, %p284
    %p287 = scmp.ne.s32.totalorder %s272, %s286
    %p288 = scmp.eq.s32.totalorder %s31, 0
    %p289 = por %p287, %p288
    %s291 = sadd.s32 %s290, 1
    %p294 = scmp.eq.s32.totalorder %s25, 1
    %p295 = scmp.ne.s32.totalorder %s290, %s292
    %p296 = scmp.eq.s32.totalorder %s25, 0
    %p297 = por %p295, %p296
    %p298 = scmp.ne.s32.totalorder %s290, %s292
    %p299 = scmp.eq.s32.totalorder %s30, 1
    %p300 = por %p298, %p299
    %p301 = scmp.ne.s32.totalorder %s292, %s293
    %p302 = scmp.eq.s32.totalorder %s30, 0
    %p303 = por %p301, %p302
    %p304 = scmp.ne.s32.totalorder %s292, %s293
    %p305 = scmp.eq.s32.totalorder %s31, 1
    %p306 = por %p304, %p305
    %p308 = scmp.ne.s32.totalorder %s293, %s307
    %p309 = scmp.eq.s32.totalorder %s31, 0
    %p310 = por %p308, %p309
    %s312 = sadd.s32 %s311, 1
    %p315 = scmp.eq.s32.totalorder %s25, 1
    %p316 = scmp.ne.s32.totalorder %s311, %s313
    %p317 = scmp.eq.s32.totalorder %s25, 0
    %p318 = por %p316, %p317
    %p319 = scmp.ne.s32.totalorder %s311, %s313
    %p320 = scmp.eq.s32.totalorder %s30, 1
    %p321 = por %p319, %p320
    %p322 = scmp.ne.s32.totalorder %s313, %s314
    %p323 = scmp.eq.s32.totalorder %s30, 0
    %p324 = por %p322, %p323
    %p325 = scmp.ne.s32.totalorder %s313, %s314
    %p326 = scmp.eq.s32.totalorder %s31, 1
    %p327 = por %p325, %p326
    %p329 = scmp.ne.s32.totalorder %s314, %s328
    %p330 = scmp.eq.s32.totalorder %s31, 0
    %p331 = por %p329, %p330
    %s333 = sadd.s32 %s332, 1
    %p336 = scmp.eq.s32.totalorder %s25, 1
    %p337 = scmp.ne.s32.totalorder %s332, %s334
    %p338 = scmp.eq.s32.totalorder %s25, 0
    %p339 = por %p337, %p338
    %p340 = scmp.ne.s32.totalorder %s332, %s334
    %p341 = scmp.eq.s32.totalorder %s30, 1
    %p342 = por %p340, %p341
    %p343 = scmp.ne.s32.totalorder %s334, %s335
    %p344 = scmp.eq.s32.totalorder %s30, 0
    %p345 = por %p343, %p344
    %p346 = scmp.ne.s32.totalorder %s334, %s335
    %p347 = scmp.eq.s32.totalorder %s31, 1
    %p348 = por %p346, %p347
    %p350 = scmp.ne.s32.totalorder %s335, %s349
    %p351 = scmp.eq.s32.totalorder %s31, 0
    %p352 = por %p350, %p351
    %s354 = sadd.s32 %s353, 1
    %p357 = scmp.eq.s32.totalorder %s25, 1
    %p358 = scmp.ne.s32.totalorder %s353, %s355
    %p359 = scmp.eq.s32.totalorder %s25, 0
    %p360 = por %p358, %p359
    %p361 = scmp.ne.s32.totalorder %s353, %s355
    %p362 = scmp.eq.s32.totalorder %s30, 1
    %p363 = por %p361, %p362
    %p364 = scmp.ne.s32.totalorder %s355, %s356
    %p365 = scmp.eq.s32.totalorder %s30, 0
    %p366 = por %p364, %p365
    %p367 = scmp.ne.s32.totalorder %s355, %s356
    %p368 = scmp.eq.s32.totalorder %s31, 1
    %p369 = por %p367, %p368
    %p371 = scmp.ne.s32.totalorder %s356, %s370
    %p372 = scmp.eq.s32.totalorder %s31, 0
    %p373 = por %p371, %p372
    %s375 = sadd.s32 %s374, 1
    %p378 = scmp.eq.s32.totalorder %s25, 1
    %p379 = scmp.ne.s32.totalorder %s374, %s376
    %p380 = scmp.eq.s32.totalorder %s25, 0
    %p381 = por %p379, %p380
    %p382 = scmp.ne.s32.totalorder %s374, %s376
    %p383 = scmp.eq.s32.totalorder %s30, 1
    %p384 = por %p382, %p383
    %p385 = scmp.ne.s32.totalorder %s376, %s377
    %p386 = scmp.eq.s32.totalorder %s30, 0
    %p387 = por %p385, %p386
    %p388 = scmp.ne.s32.totalorder %s376, %s377
    %p389 = scmp.eq.s32.totalorder %s31, 1
    %p390 = por %p388, %p389
    %p392 = scmp.ne.s32.totalorder %s377, %s391
    %p393 = scmp.eq.s32.totalorder %s31, 0
    %p394 = por %p392, %p393
    %s395 = ssub.s32 %s25, %s32
    %p396 = scmp.eq.s32.totalorder %s395, 0
    %s398 = sadd.s32 %s397, 1
    %s399 = scalar_select %p396, %s397, %s398
    %p402 = pneg %p396
    %p403 = scmp.eq.s32.totalorder %s25, 1
    %p404 = por %p402, %p403
    %p405 = scmp.ne.s32.totalorder %s397, %s400
    %p406 = scmp.eq.s32.totalorder %s25, 0
    %p407 = por %p405, %p406
    %p408 = scmp.ne.s32.totalorder %s397, %s400
    %p409 = scmp.eq.s32.totalorder %s30, 1
    %p410 = por %p408, %p409
    %p411 = scmp.ne.s32.totalorder %s400, %s401
    %p412 = scmp.eq.s32.totalorder %s30, 0
    %p413 = por %p411, %p412
    %p414 = scmp.ne.s32.totalorder %s400, %s401
    %p415 = scmp.eq.s32.totalorder %s31, 1
    %p416 = por %p414, %p415
    %p418 = scmp.ne.s32.totalorder %s401, %s417
    %p419 = scmp.eq.s32.totalorder %s31, 0
    %p420 = por %p418, %p419
    %p421 = scmp.le.s32.totalorder 1, %s25
    %p422 = scmp.lt.s32.totalorder %s25, 3
    %p423 = pnand %p421, %p422
    %p424 = pneg %p423
    // Predicated region
    $region9: #{tpu_custom_call.1} parent=5 // pred_check
      _
    $region10: #{tpu_custom_call.1} parent=5 // pred_check_branch
      %426 = sbr.rel (%p423) target = $region12
    $region11: #{tpu_custom_call.1} parent=5 // pred_region
      %s427 = ssub.s32 %s25, 1
      // Predicated region
      $region13: #{tpu_custom_call.1} parent=11 // pred_check
        %p428 = pneg %p72
      $region14: #{tpu_custom_call.1} parent=11 // pred_check_branch
        %430 = sbr.rel (%p428) target = $region16
      $region15: #{tpu_custom_call.1} parent=11 // pred_region
        _
      $region16: #{tpu_custom_call.1} parent=11 // pred_fallthru
        _
      // Predicated region
      $region17: #{tpu_custom_call.1} parent=11 // pred_check
        %p431 = pneg %p93
      $region18: #{tpu_custom_call.1} parent=11 // pred_check_branch
        %433 = sbr.rel (%p431) target = $region20
      $region19: #{tpu_custom_call.1} parent=11 // pred_region
        _
      $region20: #{tpu_custom_call.1} parent=11 // pred_fallthru
        _
      // Predicated region
      $region21: #{tpu_custom_call.1} parent=11 // pred_check
        %p434 = pneg %p114
      $region22: #{tpu_custom_call.1} parent=11 // pred_check_branch
        %436 = sbr.rel (%p434) target = $region24
      $region23: #{tpu_custom_call.1} parent=11 // pred_region
        _
      $region24: #{tpu_custom_call.1} parent=11 // pred_fallthru
        _
      // Predicated region
      $region25: #{tpu_custom_call.1} parent=11 // pred_check
        %p437 = pneg %p135
      $region26: #{tpu_custom_call.1} parent=11 // pred_check_branch
        %439 = sbr.rel (%p437) target = $region28
      $region27: #{tpu_custom_call.1} parent=11 // pred_region
        _
      $region28: #{tpu_custom_call.1} parent=11 // pred_fallthru
        _
      // Predicated region
      $region29: #{tpu_custom_call.1} parent=11 // pred_check
        %p440 = pneg %p156
      $region30: #{tpu_custom_call.1} parent=11 // pred_check_branch
        %442 = sbr.rel (%p440) target = $region32
      $region31: #{tpu_custom_call.1} parent=11 // pred_region
        _
      $region32: #{tpu_custom_call.1} parent=11 // pred_fallthru
        _
      // Predicated region
      $region33: #{tpu_custom_call.1} parent=11 // pred_check
        %p443 = pneg %p177
      $region34: #{tpu_custom_call.1} parent=11 // pred_check_branch
        %445 = sbr.rel (%p443) target = $region36
      $region35: #{tpu_custom_call.1} parent=11 // pred_region
        _
      $region36: #{tpu_custom_call.1} parent=11 // pred_fallthru
        _
      // Predicated region
      $region37: #{tpu_custom_call.1} parent=11 // pred_check
        %p446 = pneg %p198
      $region38: #{tpu_custom_call.1} parent=11 // pred_check_branch
        %448 = sbr.rel (%p446) target = $region40
      $region39: #{tpu_custom_call.1} parent=11 // pred_region
        _
      $region40: #{tpu_custom_call.1} parent=11 // pred_fallthru
        _
      // Predicated region
      $region41: #{tpu_custom_call.1} parent=11 // pred_check
        %p449 = pneg %p219
      $region42: #{tpu_custom_call.1} parent=11 // pred_check_branch
        %451 = sbr.rel (%p449) target = $region44
      $region43: #{tpu_custom_call.1} parent=11 // pred_region
        _
      $region44: #{tpu_custom_call.1} parent=11 // pred_fallthru
        _
      // Predicated region
      $region45: #{tpu_custom_call.1} parent=11 // pred_check
        %p452 = pneg %p240
      $region46: #{tpu_custom_call.1} parent=11 // pred_check_branch
        %454 = sbr.rel (%p452) target = $region48
      $region47: #{tpu_custom_call.1} parent=11 // pred_region
        _
      $region48: #{tpu_custom_call.1} parent=11 // pred_fallthru
        _
      // Predicated region
      $region49: #{tpu_custom_call.1} parent=11 // pred_check
        %p455 = pneg %p261
      $region50: #{tpu_custom_call.1} parent=11 // pred_check_branch
        %457 = sbr.rel (%p455) target = $region52
      $region51: #{tpu_custom_call.1} parent=11 // pred_region
        _
      $region52: #{tpu_custom_call.1} parent=11 // pred_fallthru
        _
      // Predicated region
      $region53: #{tpu_custom_call.1} parent=11 // pred_check
        %p458 = pneg %p282
      $region54: #{tpu_custom_call.1} parent=11 // pred_check_branch
        %460 = sbr.rel (%p458) target = $region56
      $region55: #{tpu_custom_call.1} parent=11 // pred_region
        _
      $region56: #{tpu_custom_call.1} parent=11 // pred_fallthru
        _
      // Predicated region
      $region57: #{tpu_custom_call.1} parent=11 // pred_check
        %p461 = pneg %p303
      $region58: #{tpu_custom_call.1} parent=11 // pred_check_branch
        %463 = sbr.rel (%p461) target = $region60
      $region59: #{tpu_custom_call.1} parent=11 // pred_region
        _
      $region60: #{tpu_custom_call.1} parent=11 // pred_fallthru
        _
      // Predicated region
      $region61: #{tpu_custom_call.1} parent=11 // pred_check
        %p464 = pneg %p324
      $region62: #{tpu_custom_call.1} parent=11 // pred_check_branch
        %466 = sbr.rel (%p464) target = $region64
      $region63: #{tpu_custom_call.1} parent=11 // pred_region
        _
      $region64: #{tpu_custom_call.1} parent=11 // pred_fallthru
        _
      // Predicated region
      $region65: #{tpu_custom_call.1} parent=11 // pred_check
        %p467 = pneg %p345
      $region66: #{tpu_custom_call.1} parent=11 // pred_check_branch
        %469 = sbr.rel (%p467) target = $region68
      $region67: #{tpu_custom_call.1} parent=11 // pred_region
        _
      $region68: #{tpu_custom_call.1} parent=11 // pred_fallthru
        _
      // Predicated region
      $region69: #{tpu_custom_call.1} parent=11 // pred_check
        %p470 = pneg %p366
      $region70: #{tpu_custom_call.1} parent=11 // pred_check_branch
        %472 = sbr.rel (%p470) target = $region72
      $region71: #{tpu_custom_call.1} parent=11 // pred_region
        _
      $region72: #{tpu_custom_call.1} parent=11 // pred_fallthru
        _
      // Predicated region
      $region73: #{tpu_custom_call.1} parent=11 // pred_check
        %p473 = pneg %p387
      $region74: #{tpu_custom_call.1} parent=11 // pred_check_branch
        %475 = sbr.rel (%p473) target = $region76
      $region75: #{tpu_custom_call.1} parent=11 // pred_region
        _
      $region76: #{tpu_custom_call.1} parent=11 // pred_fallthru
        _
    $region12: #{tpu_custom_call.1} parent=5 // pred_fallthru
      _
    %p476 = scmp.lt.s32.totalorder %s25, 2
    // Predicated region
    $region77: #{tpu_custom_call.1} parent=5 // pred_check
      %p477 = pneg %p476
    $region78: #{tpu_custom_call.1} parent=5 // pred_check_branch
      %479 = sbr.rel (%p477) target = $region80
    $region79: #{tpu_custom_call.1} parent=5 // pred_region
      // Predicated region
      $region81: #{tpu_custom_call.1} parent=79 // pred_check
        %p480 = pneg %p45
      $region82: #{tpu_custom_call.1} parent=79 // pred_check_branch
        %482 = sbr.rel (%p480) target = $region84
      $region83: #{tpu_custom_call.1} parent=79 // pred_region
        %s483 = smul.u32 4, %s25
        %p484 = scmp.lt.s32.totalorder %s483, 7
        %s485 = scalar_select %p484, %s483, 7
        %s486 = smul.addr %s485, 8
        %s487 = scalar_lea.vmem %s0, %s486
        %s488 = smul.u32 4, %s25
      $region84: #{tpu_custom_call.1} parent=79 // pred_fallthru
        _
    $region80: #{tpu_custom_call.1} parent=5 // pred_fallthru
      _
    %p489 = scmp.le.s32.totalorder 1, %s25
    %p490 = scmp.lt.s32.totalorder %s25, 3
    %p491 = pnand %p489, %p490
    %p492 = pneg %p491
    // Predicated region
    $region85: #{tpu_custom_call.1} parent=5 // pred_check
      _
    $region86: #{tpu_custom_call.1} parent=5 // pred_check_branch
      %494 = sbr.rel (%p491) target = $region88
    $region87: #{tpu_custom_call.1} parent=5 // pred_region
      %s495 = ssub.s32 %s25, 1
      %s496 = smul.u32 4, %s30
      %p497 = scmp.lt.s32.totalorder %s496, 7
      %s498 = scalar_select %p497, %s496, 7
      %s499 = smul.addr %s498, 8
      %s500 = scalar_lea.vmem %s0, %s499
      %p501 = pneg %p51
      %p502 = pneg %p48
      %p503 = pneg %p72
      %p504 = pneg %p69
      %p505 = pneg %p93
      %p506 = pneg %p90
      %p507 = pneg %p114
      %p508 = pneg %p111
      %p509 = pneg %p135
      %p510 = pneg %p132
      %p511 = pneg %p156
      %p512 = pneg %p153
      %p513 = pneg %p177
      %p514 = pneg %p174
      %p515 = pneg %p198
      %p516 = pneg %p195
      %p517 = pneg %p219
      %p518 = pneg %p216
      %p519 = pneg %p240
      %p520 = pneg %p237
      %p521 = pneg %p261
      %p522 = pneg %p258
      %p523 = pneg %p282
      %p524 = pneg %p279
      %p525 = pneg %p303
      %p526 = pneg %p300
      %p527 = pneg %p324
      %p528 = pneg %p321
      %p529 = pneg %p345
      %p530 = pneg %p342
      %p531 = pneg %p366
      %p532 = pneg %p363
      %p533 = pneg %p387
      %p534 = pneg %p384
      %p535 = pneg %p413
      %p536 = pneg %p410
      %s537 = smul.u32 4, %s30
      %p538 = scmp.lt.s32.totalorder %s537, 7
      %s539 = scalar_select %p538, %s537, 7
      %s540 = smul.addr %s539, 8
      %s541 = scalar_lea.vmem %s17, %s540
      %s542 = smul.u32 4, %s30
      %p543 = scmp.lt.s32.totalorder %s542, 7
      %s544 = scalar_select %p543, %s542, 7
      %s545 = smul.addr %s544, 8
      %s546 = scalar_lea.vmem %s0, %s545
      %s547 = smul.u32 4, %s30
      %s548 = smul.u32 4, %s30
      %p549 = scmp.lt.s32.totalorder %s548, 7
      %s550 = scalar_select %p549, %s548, 7
      %s551 = smul.addr %s550, 8
      %s552 = scalar_lea.vmem %s17, %s551
      %s553 = smul.u32 4, %s30
      %v555 = vld [vmem:[%s546] sm:$0xff]
      %v556 = vld [vmem:[%s546 + $0x8] sm:$0xff]
      %v557 = vld [vmem:[%s546 + $0x10] sm:$0xff]
      %v558 = vld [vmem:[%s546 + $0x18] sm:$0xff]
      %v559 = vpack.c.bf16 %v556, %v555
      %v560 = vpack.c.bf16 %v558, %v557
      %v561 = vld [vmem:[%s1] sm:$0xf]
      %v562 = vld [vmem:[%s1 + $0x4] sm:$0xf]
      %v563 = vld [vmem:[%s1 + $0x8] sm:$0xf]
      %v564 = vld [vmem:[%s1 + $0xc] sm:$0xf]
      %v565 = vld [vmem:[%s2] sm:$0x1]
      %v567 = vperm.slane %v565, 0
      %v573 = vunpack.c.l.b16 %v561
      %v574 = vunpack.c.l.b16 %v562
      %v575 = vunpack.c.l.b16 %v563
      %v576 = vunpack.c.l.b16 %v564
      %v577 = vpack.c.b16 %v574, %v573
      %v578 = vpack.c.b16 %v576, %v575
      %vm581 = vcmask 261120
      %v583 = vsel %vm581, %v559, 0
      %v586 = vsel %vm581, %v560, 0
      %588 = vmatpush.bf16.msra.mxu0 0
      %589 = vmatpush.bf16.msra.mxu0 0
      %590 = vmatpush.bf16.msra.mxu0 0
      %591 = vmatpush.bf16.msra.mxu0 0
      %592 = vmatpush.bf16.msra.mxu0 0
      %593 = vmatpush.bf16.msra.mxu0 0
      %594 = vmatpush.bf16.msra.mxu0 %v578
      %595 = vmatpush.bf16.msra.mxu0 %v577
      %596 = vmatmul.bf16.gmra.mxu0 %v583
      %v597 = vpop.f32.mrf.mxu0
      %v598 = vadd.f32 %v567, %v597
      %v599 = vpop.f32.mrf.mxu0
      %v600 = vadd.f32 %v567, %v599
      %601 = vmatmul.bf16.gmra.mxu0 %v586
      %v602 = vpop.f32.mrf.mxu0
      %v603 = vadd.f32 %v567, %v602
      %v604 = vpop.f32.mrf.mxu0
      %v605 = vadd.f32 %v567, %v604
      %606 = vdwg.mxu0
      %v607 = vpack.c.bf16 %v600, %v598
      %v608 = vpack.c.bf16 %v605, %v603
      %v609 = vld [vmem:[%s3] sm:$0xf]
      %v610 = vld [vmem:[%s3 + $0x4] sm:$0xf]
      %v611 = vld [vmem:[%s3 + $0x8] sm:$0xf]
      %v612 = vld [vmem:[%s3 + $0xc] sm:$0xf]
      %v613 = vld [vmem:[%s3 + $0x10] sm:$0xf]
      %v614 = vld [vmem:[%s3 + $0x14] sm:$0xf]
      %v615 = vld [vmem:[%s3 + $0x18] sm:$0xf]
      %v616 = vld [vmem:[%s3 + $0x1c] sm:$0xf]
      %v617 = vld [vmem:[%s3 + $0x20] sm:$0xf]
      %v618 = vld [vmem:[%s3 + $0x24] sm:$0xf]
      %v619 = vld [vmem:[%s3 + $0x28] sm:$0xf]
      %v620 = vld [vmem:[%s3 + $0x2c] sm:$0xf]
      %v621 = vld [vmem:[%s3 + $0x30] sm:$0xf]
      %v622 = vld [vmem:[%s3 + $0x34] sm:$0xf]
      %v623 = vld [vmem:[%s3 + $0x38] sm:$0xf]
      %v624 = vld [vmem:[%s3 + $0x3c] sm:$0xf]
      %v625 = vld [vmem:[%s4] sm:$0x1]
      %v627 = vperm.slane %v625, 0
      %v645 = vunpack.c.l.b16 %v609
      %v646 = vunpack.c.l.b16 %v610
      %v647 = vunpack.c.l.b16 %v611
      %v648 = vunpack.c.l.b16 %v612
      %v649 = vunpack.c.l.b16 %v613
      %v650 = vunpack.c.l.b16 %v614
      %v651 = vunpack.c.l.b16 %v615
      %v652 = vunpack.c.l.b16 %v616
      %v653 = vunpack.c.l.b16 %v617
      %v654 = vunpack.c.l.b16 %v618
      %v655 = vunpack.c.l.b16 %v619
      %v656 = vunpack.c.l.b16 %v620
      %v657 = vunpack.c.l.b16 %v621
      %v658 = vunpack.c.l.b16 %v622
      %v659 = vunpack.c.l.b16 %v623
      %v660 = vunpack.c.l.b16 %v624
      %v661 = vpack.c.b16 %v646, %v645
      %v662 = vpack.c.b16 %v648, %v647
      %v663 = vpack.c.b16 %v650, %v649
      %v664 = vpack.c.b16 %v652, %v651
      %v665 = vpack.c.b16 %v654, %v653
      %v666 = vpack.c.b16 %v656, %v655
      %v667 = vpack.c.b16 %v658, %v657
      %v668 = vpack.c.b16 %v660, %v659
      %677 = vmatpush.bf16.msra.mxu0 %v668
      %678 = vmatpush.bf16.msra.mxu0 %v667
      %679 = vmatpush.bf16.msra.mxu0 %v666
      %680 = vmatpush.bf16.msra.mxu0 %v665
      %681 = vmatpush.bf16.msra.mxu0 %v664
      %682 = vmatpush.bf16.msra.mxu0 %v663
      %683 = vmatpush.bf16.msra.mxu0 %v662
      %684 = vmatpush.bf16.msra.mxu0 %v661
      %685 = vmatmul.bf16.gmra.mxu0 %v607
      %v686 = vpop.f32.mrf.mxu0
      %v687 = vadd.f32 %v627, %v686
      %v688 = vpop.f32.mrf.mxu0
      %v689 = vadd.f32 %v627, %v688
      %690 = vmatmul.bf16.gmra.mxu0 %v608
      %v691 = vpop.f32.mrf.mxu0
      %v692 = vadd.f32 %v627, %v691
      %v693 = vpop.f32.mrf.mxu0
      %v694 = vadd.f32 %v627, %v693
      %695 = vdwg.mxu0
      %v696 = vadd.f32 %v687, %v598
      %v697 = vadd.f32 %v689, %v600
      %v698 = vadd.f32 %v692, %v603
      %v699 = vadd.f32 %v694, %v605
      %v700 = vld [vmem:[%s5] sm:$0x1]
      %v701 = vld [vmem:[%s6] sm:$0x1]
      %702 = vadd.xlane.f32.xlu0 %v696
      %v703 = vpop.xlane.xlu0 %702
      %704 = vadd.xlane.f32.xlu0 %v697
      %v705 = vpop.xlane.xlu0 %704
      %706 = vadd.xlane.f32.xlu0 %v698
      %v707 = vpop.xlane.xlu0 %706
      %708 = vadd.xlane.f32.xlu0 %v699
      %v709 = vpop.xlane.xlu0 %708
      %v710 = vrcp.pop 128.0
      %v711 = vmul.f32 128.0, %v710
      %v712 = vsub.f32 1.0, %v711
      %v713 = vmul.f32 %v710, %v712
      %v714 = vadd.f32 %v710, %v713
      %vm715 = vweird.f32 %v710
      %v716 = vsel %vm715, %v710, %v714
      %v717 = vmul.f32 %v703, %v716
      %v718 = vmul.f32 %v705, %v716
      %v719 = vmul.f32 %v707, %v716
      %v720 = vmul.f32 %v709, %v716
      %v721 = vmul.f32 %v696, %v696
      %v722 = vmul.f32 %v697, %v697
      %v723 = vmul.f32 %v698, %v698
      %v724 = vmul.f32 %v699, %v699
      %725 = vadd.xlane.f32.xlu0 %v721
      %v726 = vpop.xlane.xlu0 %725
      %727 = vadd.xlane.f32.xlu0 %v722
      %v728 = vpop.xlane.xlu0 %727
      %729 = vadd.xlane.f32.xlu0 %v723
      %v730 = vpop.xlane.xlu0 %729
      %731 = vadd.xlane.f32.xlu0 %v724
      %v732 = vpop.xlane.xlu0 %731
      %v733 = vmul.f32 %v726, %v716
      %v734 = vmul.f32 %v728, %v716
      %v735 = vmul.f32 %v730, %v716
      %v736 = vmul.f32 %v732, %v716
      %v737 = vmul.f32 %v717, %v717
      %v738 = vmul.f32 %v718, %v718
      %v739 = vmul.f32 %v719, %v719
      %v740 = vmul.f32 %v720, %v720
      %v741 = vsub.f32 %v733, %v737
      %v742 = vsub.f32 %v734, %v738
      %v743 = vsub.f32 %v735, %v739
      %v744 = vsub.f32 %v736, %v740
      %v745 = vmax.f32 %v741, 0.0
      %v746 = vmax.f32 %v742, 0.0
      %v747 = vmax.f32 %v743, 0.0
      %v748 = vmax.f32 %v744, 0.0
      %v749 = vsub.f32 %v696, %v717
      %v750 = vsub.f32 %v697, %v718
      %v751 = vsub.f32 %v698, %v719
      %v752 = vsub.f32 %v699, %v720
      %v753 = vadd.f32 %v745, 1e-05
      %v754 = vadd.f32 %v746, 1e-05
      %v755 = vadd.f32 %v747, 1e-05
      %v756 = vadd.f32 %v748, 1e-05
      %v757 = vrsqrt.pop %v753
      %v758 = vmul.f32 %v757, %v753
      %v759 = vmul.f32 %v758, %v757
      %v760 = vmul.f32 0.5, %v759
      %v761 = vsub.f32 1.5, %v760
      %v762 = vmul.f32 %v757, %v761
      %vm763 = vweird.f32 %v753
      %vm764 = vweird.f32 %v757
      %vm765 = vmor %vm763, %vm764
      %v766 = vsel %vm765, %v757, %v762
      %v767 = vrsqrt.pop %v754
      %v768 = vmul.f32 %v767, %v754
      %v769 = vmul.f32 %v768, %v767
      %v770 = vmul.f32 0.5, %v769
      %v771 = vsub.f32 1.5, %v770
      %v772 = vmul.f32 %v767, %v771
      %vm773 = vweird.f32 %v754
      %vm774 = vweird.f32 %v767
      %vm775 = vmor %vm773, %vm774
      %v776 = vsel %vm775, %v767, %v772
      %v777 = vrsqrt.pop %v755
      %v778 = vmul.f32 %v777, %v755
      %v779 = vmul.f32 %v778, %v777
      %v780 = vmul.f32 0.5, %v779
      %v781 = vsub.f32 1.5, %v780
      %v782 = vmul.f32 %v777, %v781
      %vm783 = vweird.f32 %v755
      %vm784 = vweird.f32 %v777
      %vm785 = vmor %vm783, %vm784
      %v786 = vsel %vm785, %v777, %v782
      %v787 = vrsqrt.pop %v756
      %v788 = vmul.f32 %v787, %v756
      %v789 = vmul.f32 %v788, %v787
      %v790 = vmul.f32 0.5, %v789
      %v791 = vsub.f32 1.5, %v790
      %v792 = vmul.f32 %v787, %v791
      %vm793 = vweird.f32 %v756
      %vm794 = vweird.f32 %v787
      %vm795 = vmor %vm793, %vm794
      %v796 = vsel %vm795, %v787, %v792
      %v797 = vmul.f32 %v749, %v766
      %v798 = vmul.f32 %v750, %v776
      %v799 = vmul.f32 %v751, %v786
      %v800 = vmul.f32 %v752, %v796
      %v802 = vperm.slane %v700, 0
      %v804 = vmul.f32 %v797, %v802
      %v805 = vmul.f32 %v798, %v802
      %v806 = vmul.f32 %v799, %v802
      %v807 = vmul.f32 %v800, %v802
      %v809 = vperm.slane %v701, 0
      %v811 = vadd.f32 %v804, %v809
      %v812 = vadd.f32 %v805, %v809
      %v813 = vadd.f32 %v806, %v809
      %v814 = vadd.f32 %v807, %v809
      %v815 = vmax.f32 %v811, 0.0
      %v816 = vmax.f32 %v812, 0.0
      %v817 = vmax.f32 %v813, 0.0
      %v818 = vmax.f32 %v814, 0.0
      %v819 = vpack.c.bf16 %v816, %v815
      %v820 = vpack.c.bf16 %v818, %v817
      %v821 = vld [vmem:[%s7] sm:$0xf]
      %v822 = vld [vmem:[%s7 + $0x4] sm:$0xf]
      %v823 = vld [vmem:[%s7 + $0x8] sm:$0xf]
      %v824 = vld [vmem:[%s7 + $0xc] sm:$0xf]
      %v825 = vld [vmem:[%s7 + $0x10] sm:$0xf]
      %v826 = vld [vmem:[%s7 + $0x14] sm:$0xf]
      %v827 = vld [vmem:[%s7 + $0x18] sm:$0xf]
      %v828 = vld [vmem:[%s7 + $0x1c] sm:$0xf]
      %v829 = vld [vmem:[%s7 + $0x20] sm:$0xf]
      %v830 = vld [vmem:[%s7 + $0x24] sm:$0xf]
      %v831 = vld [vmem:[%s7 + $0x28] sm:$0xf]
      %v832 = vld [vmem:[%s7 + $0x2c] sm:$0xf]
      %v833 = vld [vmem:[%s7 + $0x30] sm:$0xf]
      %v834 = vld [vmem:[%s7 + $0x34] sm:$0xf]
      %v835 = vld [vmem:[%s7 + $0x38] sm:$0xf]
      %v836 = vld [vmem:[%s7 + $0x3c] sm:$0xf]
      %v837 = vld [vmem:[%s8] sm:$0x1]
      %v839 = vperm.slane %v837, 0
      %v857 = vunpack.c.l.b16 %v821
      %v858 = vunpack.c.l.b16 %v822
      %v859 = vunpack.c.l.b16 %v823
      %v860 = vunpack.c.l.b16 %v824
      %v861 = vunpack.c.l.b16 %v825
      %v862 = vunpack.c.l.b16 %v826
      %v863 = vunpack.c.l.b16 %v827
      %v864 = vunpack.c.l.b16 %v828
      %v865 = vunpack.c.l.b16 %v829
      %v866 = vunpack.c.l.b16 %v830
      %v867 = vunpack.c.l.b16 %v831
      %v868 = vunpack.c.l.b16 %v832
      %v869 = vunpack.c.l.b16 %v833
      %v870 = vunpack.c.l.b16 %v834
      %v871 = vunpack.c.l.b16 %v835
      %v872 = vunpack.c.l.b16 %v836
      %v873 = vpack.c.b16 %v858, %v857
      %v874 = vpack.c.b16 %v860, %v859
      %v875 = vpack.c.b16 %v862, %v861
      %v876 = vpack.c.b16 %v864, %v863
      %v877 = vpack.c.b16 %v866, %v865
      %v878 = vpack.c.b16 %v868, %v867
      %v879 = vpack.c.b16 %v870, %v869
      %v880 = vpack.c.b16 %v872, %v871
      %889 = vmatpush.bf16.msra.mxu0 %v880
      %890 = vmatpush.bf16.msra.mxu0 %v879
      %891 = vmatpush.bf16.msra.mxu0 %v878
      %892 = vmatpush.bf16.msra.mxu0 %v877
      %893 = vmatpush.bf16.msra.mxu0 %v876
      %894 = vmatpush.bf16.msra.mxu0 %v875
      %895 = vmatpush.bf16.msra.mxu0 %v874
      %896 = vmatpush.bf16.msra.mxu0 %v873
      %897 = vmatmul.bf16.gmra.mxu0 %v819
      %v898 = vpop.f32.mrf.mxu0
      %v899 = vadd.f32 %v839, %v898
      %v900 = vpop.f32.mrf.mxu0
      %v901 = vadd.f32 %v839, %v900
      %902 = vmatmul.bf16.gmra.mxu0 %v820
      %v903 = vpop.f32.mrf.mxu0
      %v904 = vadd.f32 %v839, %v903
      %v905 = vpop.f32.mrf.mxu0
      %v906 = vadd.f32 %v839, %v905
      %907 = vdwg.mxu0
      %v908 = vld [vmem:[%s9] sm:$0x1]
      %v909 = vld [vmem:[%s10] sm:$0x1]
      %910 = vadd.xlane.f32.xlu0 %v899
      %v911 = vpop.xlane.xlu0 %910
      %912 = vadd.xlane.f32.xlu0 %v901
      %v913 = vpop.xlane.xlu0 %912
      %914 = vadd.xlane.f32.xlu0 %v904
      %v915 = vpop.xlane.xlu0 %914
      %916 = vadd.xlane.f32.xlu0 %v906
      %v917 = vpop.xlane.xlu0 %916
      %v918 = vmul.f32 %v911, %v716
      %v919 = vmul.f32 %v913, %v716
      %v920 = vmul.f32 %v915, %v716
      %v921 = vmul.f32 %v917, %v716
      %v922 = vmul.f32 %v899, %v899
      %v923 = vmul.f32 %v901, %v901
      %v924 = vmul.f32 %v904, %v904
      %v925 = vmul.f32 %v906, %v906
      %926 = vadd.xlane.f32.xlu0 %v922
      %v927 = vpop.xlane.xlu0 %926
      %928 = vadd.xlane.f32.xlu0 %v923
      %v929 = vpop.xlane.xlu0 %928
      %930 = vadd.xlane.f32.xlu0 %v924
      %v931 = vpop.xlane.xlu0 %930
      %932 = vadd.xlane.f32.xlu0 %v925
      %v933 = vpop.xlane.xlu0 %932
      %v934 = vmul.f32 %v927, %v716
      %v935 = vmul.f32 %v929, %v716
      %v936 = vmul.f32 %v931, %v716
      %v937 = vmul.f32 %v933, %v716
      %v938 = vmul.f32 %v918, %v918
      %v939 = vmul.f32 %v919, %v919
      %v940 = vmul.f32 %v920, %v920
      %v941 = vmul.f32 %v921, %v921
      %v942 = vsub.f32 %v934, %v938
      %v943 = vsub.f32 %v935, %v939
      %v944 = vsub.f32 %v936, %v940
      %v945 = vsub.f32 %v937, %v941
      %v946 = vmax.f32 %v942, 0.0
      %v947 = vmax.f32 %v943, 0.0
      %v948 = vmax.f32 %v944, 0.0
      %v949 = vmax.f32 %v945, 0.0
      %v950 = vsub.f32 %v899, %v918
      %v951 = vsub.f32 %v901, %v919
      %v952 = vsub.f32 %v904, %v920
      %v953 = vsub.f32 %v906, %v921
      %v954 = vadd.f32 %v946, 1e-05
      %v955 = vadd.f32 %v947, 1e-05
      %v956 = vadd.f32 %v948, 1e-05
      %v957 = vadd.f32 %v949, 1e-05
      %v958 = vrsqrt.pop %v954
      %v959 = vmul.f32 %v958, %v954
      %v960 = vmul.f32 %v959, %v958
      %v961 = vmul.f32 0.5, %v960
      %v962 = vsub.f32 1.5, %v961
      %v963 = vmul.f32 %v958, %v962
      %vm964 = vweird.f32 %v954
      %vm965 = vweird.f32 %v958
      %vm966 = vmor %vm964, %vm965
      %v967 = vsel %vm966, %v958, %v963
      %v968 = vrsqrt.pop %v955
      %v969 = vmul.f32 %v968, %v955
      %v970 = vmul.f32 %v969, %v968
      %v971 = vmul.f32 0.5, %v970
      %v972 = vsub.f32 1.5, %v971
      %v973 = vmul.f32 %v968, %v972
      %vm974 = vweird.f32 %v955
      %vm975 = vweird.f32 %v968
      %vm976 = vmor %vm974, %vm975
      %v977 = vsel %vm976, %v968, %v973
      %v978 = vrsqrt.pop %v956
      %v979 = vmul.f32 %v978, %v956
      %v980 = vmul.f32 %v979, %v978
      %v981 = vmul.f32 0.5, %v980
      %v982 = vsub.f32 1.5, %v981
      %v983 = vmul.f32 %v978, %v982
      %vm984 = vweird.f32 %v956
      %vm985 = vweird.f32 %v978
      %vm986 = vmor %vm984, %vm985
      %v987 = vsel %vm986, %v978, %v983
      %v988 = vrsqrt.pop %v957
      %v989 = vmul.f32 %v988, %v957
      %v990 = vmul.f32 %v989, %v988
      %v991 = vmul.f32 0.5, %v990
      %v992 = vsub.f32 1.5, %v991
      %v993 = vmul.f32 %v988, %v992
      %vm994 = vweird.f32 %v957
      %vm995 = vweird.f32 %v988
      %vm996 = vmor %vm994, %vm995
      %v997 = vsel %vm996, %v988, %v993
      %v998 = vmul.f32 %v950, %v967
      %v999 = vmul.f32 %v951, %v977
      %v1000 = vmul.f32 %v952, %v987
      %v1001 = vmul.f32 %v953, %v997
      %v1003 = vperm.slane %v908, 0
      %v1005 = vmul.f32 %v998, %v1003
      %v1006 = vmul.f32 %v999, %v1003
      %v1007 = vmul.f32 %v1000, %v1003
      %v1008 = vmul.f32 %v1001, %v1003
      %v1010 = vperm.slane %v909, 0
      %v1012 = vadd.f32 %v1005, %v1010
      %v1013 = vadd.f32 %v1006, %v1010
      %v1014 = vadd.f32 %v1007, %v1010
      %v1015 = vadd.f32 %v1008, %v1010
      %v1016 = vmax.f32 %v1012, 0.0
      %v1017 = vmax.f32 %v1013, 0.0
      %v1018 = vmax.f32 %v1014, 0.0
      %v1019 = vmax.f32 %v1015, 0.0
      %v1020 = vpack.c.bf16 %v1017, %v1016
      %v1021 = vpack.c.bf16 %v1019, %v1018
      %v1022 = vld [vmem:[%s11] sm:$0xf]
      %v1023 = vld [vmem:[%s11 + $0x4] sm:$0xf]
      %v1024 = vld [vmem:[%s11 + $0x8] sm:$0xf]
      %v1025 = vld [vmem:[%s11 + $0xc] sm:$0xf]
      %v1026 = vld [vmem:[%s11 + $0x10] sm:$0xf]
      %v1027 = vld [vmem:[%s11 + $0x14] sm:$0xf]
      %v1028 = vld [vmem:[%s11 + $0x18] sm:$0xf]
      %v1029 = vld [vmem:[%s11 + $0x1c] sm:$0xf]
      %v1030 = vld [vmem:[%s11 + $0x20] sm:$0xf]
      %v1031 = vld [vmem:[%s11 + $0x24] sm:$0xf]
      %v1032 = vld [vmem:[%s11 + $0x28] sm:$0xf]
      %v1033 = vld [vmem:[%s11 + $0x2c] sm:$0xf]
      %v1034 = vld [vmem:[%s11 + $0x30] sm:$0xf]
      %v1035 = vld [vmem:[%s11 + $0x34] sm:$0xf]
      %v1036 = vld [vmem:[%s11 + $0x38] sm:$0xf]
      %v1037 = vld [vmem:[%s11 + $0x3c] sm:$0xf]
      %v1038 = vld [vmem:[%s12] sm:$0x1]
      %v1040 = vperm.slane %v1038, 0
      %v1058 = vunpack.c.l.b16 %v1022
      %v1059 = vunpack.c.l.b16 %v1023
      %v1060 = vunpack.c.l.b16 %v1024
      %v1061 = vunpack.c.l.b16 %v1025
      %v1062 = vunpack.c.l.b16 %v1026
      %v1063 = vunpack.c.l.b16 %v1027
      %v1064 = vunpack.c.l.b16 %v1028
      %v1065 = vunpack.c.l.b16 %v1029
      %v1066 = vunpack.c.l.b16 %v1030
      %v1067 = vunpack.c.l.b16 %v1031
      %v1068 = vunpack.c.l.b16 %v1032
      %v1069 = vunpack.c.l.b16 %v1033
      %v1070 = vunpack.c.l.b16 %v1034
      %v1071 = vunpack.c.l.b16 %v1035
      %v1072 = vunpack.c.l.b16 %v1036
      %v1073 = vunpack.c.l.b16 %v1037
      %v1074 = vpack.c.b16 %v1059, %v1058
      %v1075 = vpack.c.b16 %v1061, %v1060
      %v1076 = vpack.c.b16 %v1063, %v1062
      %v1077 = vpack.c.b16 %v1065, %v1064
      %v1078 = vpack.c.b16 %v1067, %v1066
      %v1079 = vpack.c.b16 %v1069, %v1068
      %v1080 = vpack.c.b16 %v1071, %v1070
      %v1081 = vpack.c.b16 %v1073, %v1072
      %1090 = vmatpush.bf16.msra.mxu0 %v1081
      %1091 = vmatpush.bf16.msra.mxu0 %v1080
      %1092 = vmatpush.bf16.msra.mxu0 %v1079
      %1093 = vmatpush.bf16.msra.mxu0 %v1078
      %1094 = vmatpush.bf16.msra.mxu0 %v1077
      %1095 = vmatpush.bf16.msra.mxu0 %v1076
      %1096 = vmatpush.bf16.msra.mxu0 %v1075
      %1097 = vmatpush.bf16.msra.mxu0 %v1074
      %1098 = vmatmul.bf16.gmra.mxu0 %v1020
      %v1099 = vpop.f32.mrf.mxu0
      %v1100 = vadd.f32 %v1040, %v1099
      %v1101 = vpop.f32.mrf.mxu0
      %v1102 = vadd.f32 %v1040, %v1101
      %1103 = vmatmul.bf16.gmra.mxu0 %v1021
      %v1104 = vpop.f32.mrf.mxu0
      %v1105 = vadd.f32 %v1040, %v1104
      %v1106 = vpop.f32.mrf.mxu0
      %v1107 = vadd.f32 %v1040, %v1106
      %1108 = vdwg.mxu0
      %v1109 = vld [vmem:[%s13] sm:$0x1]
      %v1110 = vld [vmem:[%s14] sm:$0x1]
      %vm1111 = vcmask 523264
      %v1112 = vsel %vm1111, %v1100, 0.0
      %1113 = vadd.xlane.f32.xlu0 %v1112
      %v1114 = vpop.xlane.xlu0 %1113
      %v1115 = vsel %vm1111, %v1102, 0.0
      %1116 = vadd.xlane.f32.xlu0 %v1115
      %v1117 = vpop.xlane.xlu0 %1116
      %v1118 = vsel %vm1111, %v1105, 0.0
      %1119 = vadd.xlane.f32.xlu0 %v1118
      %v1120 = vpop.xlane.xlu0 %1119
      %v1121 = vsel %vm1111, %v1107, 0.0
      %1122 = vadd.xlane.f32.xlu0 %v1121
      %v1123 = vpop.xlane.xlu0 %1122
      %v1124 = vrcp.pop 64.0
      %v1125 = vmul.f32 64.0, %v1124
      %v1126 = vsub.f32 1.0, %v1125
      %v1127 = vmul.f32 %v1124, %v1126
      %v1128 = vadd.f32 %v1124, %v1127
      %vm1129 = vweird.f32 %v1124
      %v1130 = vsel %vm1129, %v1124, %v1128
      %v1131 = vmul.f32 %v1114, %v1130
      %v1132 = vmul.f32 %v1117, %v1130
      %v1133 = vmul.f32 %v1120, %v1130
      %v1134 = vmul.f32 %v1123, %v1130
      %v1135 = vmul.f32 %v1100, %v1100
      %v1136 = vmul.f32 %v1102, %v1102
      %v1137 = vmul.f32 %v1105, %v1105
      %v1138 = vmul.f32 %v1107, %v1107
      %v1139 = vsel %vm1111, %v1135, 0.0
      %1140 = vadd.xlane.f32.xlu0 %v1139
      %v1141 = vpop.xlane.xlu0 %1140
      %v1142 = vsel %vm1111, %v1136, 0.0
      %1143 = vadd.xlane.f32.xlu0 %v1142
      %v1144 = vpop.xlane.xlu0 %1143
      %v1145 = vsel %vm1111, %v1137, 0.0
      %1146 = vadd.xlane.f32.xlu0 %v1145
      %v1147 = vpop.xlane.xlu0 %1146
      %v1148 = vsel %vm1111, %v1138, 0.0
      %1149 = vadd.xlane.f32.xlu0 %v1148
      %v1150 = vpop.xlane.xlu0 %1149
      %v1151 = vmul.f32 %v1141, %v1130
      %v1152 = vmul.f32 %v1144, %v1130
      %v1153 = vmul.f32 %v1147, %v1130
      %v1154 = vmul.f32 %v1150, %v1130
      %v1155 = vmul.f32 %v1131, %v1131
      %v1156 = vmul.f32 %v1132, %v1132
      %v1157 = vmul.f32 %v1133, %v1133
      %v1158 = vmul.f32 %v1134, %v1134
      %v1159 = vsub.f32 %v1151, %v1155
      %v1160 = vsub.f32 %v1152, %v1156
      %v1161 = vsub.f32 %v1153, %v1157
      %v1162 = vsub.f32 %v1154, %v1158
      %v1163 = vmax.f32 %v1159, 0.0
      %v1164 = vmax.f32 %v1160, 0.0
      %v1165 = vmax.f32 %v1161, 0.0
      %v1166 = vmax.f32 %v1162, 0.0
      %v1167 = vsub.f32 %v1100, %v1131
      %v1168 = vsub.f32 %v1102, %v1132
      %v1169 = vsub.f32 %v1105, %v1133
      %v1170 = vsub.f32 %v1107, %v1134
      %v1171 = vadd.f32 %v1163, 1e-05
      %v1172 = vadd.f32 %v1164, 1e-05
      %v1173 = vadd.f32 %v1165, 1e-05
      %v1174 = vadd.f32 %v1166, 1e-05
      %v1175 = vrsqrt.pop %v1171
      %v1176 = vmul.f32 %v1175, %v1171
      %v1177 = vmul.f32 %v1176, %v1175
      %v1178 = vmul.f32 0.5, %v1177
      %v1179 = vsub.f32 1.5, %v1178
      %v1180 = vmul.f32 %v1175, %v1179
      %vm1181 = vweird.f32 %v1171
      %vm1182 = vweird.f32 %v1175
      %vm1183 = vmor %vm1181, %vm1182
      %v1184 = vsel %vm1183, %v1175, %v1180
      %v1185 = vrsqrt.pop %v1172
      %v1186 = vmul.f32 %v1185, %v1172
      %v1187 = vmul.f32 %v1186, %v1185
      %v1188 = vmul.f32 0.5, %v1187
      %v1189 = vsub.f32 1.5, %v1188
      %v1190 = vmul.f32 %v1185, %v1189
      %vm1191 = vweird.f32 %v1172
      %vm1192 = vweird.f32 %v1185
      %vm1193 = vmor %vm1191, %vm1192
      %v1194 = vsel %vm1193, %v1185, %v1190
      %v1195 = vrsqrt.pop %v1173
      %v1196 = vmul.f32 %v1195, %v1173
      %v1197 = vmul.f32 %v1196, %v1195
      %v1198 = vmul.f32 0.5, %v1197
      %v1199 = vsub.f32 1.5, %v1198
      %v1200 = vmul.f32 %v1195, %v1199
      %vm1201 = vweird.f32 %v1173
      %vm1202 = vweird.f32 %v1195
      %vm1203 = vmor %vm1201, %vm1202
      %v1204 = vsel %vm1203, %v1195, %v1200
      %v1205 = vrsqrt.pop %v1174
      %v1206 = vmul.f32 %v1205, %v1174
      %v1207 = vmul.f32 %v1206, %v1205
      %v1208 = vmul.f32 0.5, %v1207
      %v1209 = vsub.f32 1.5, %v1208
      %v1210 = vmul.f32 %v1205, %v1209
      %vm1211 = vweird.f32 %v1174
      %vm1212 = vweird.f32 %v1205
      %vm1213 = vmor %vm1211, %vm1212
      %v1214 = vsel %vm1213, %v1205, %v1210
      %v1215 = vmul.f32 %v1167, %v1184
      %v1216 = vmul.f32 %v1168, %v1194
      %v1217 = vmul.f32 %v1169, %v1204
      %v1218 = vmul.f32 %v1170, %v1214
      %v1220 = vperm.slane %v1109, 0
      %v1222 = vmul.f32 %v1215, %v1220
      %v1223 = vmul.f32 %v1216, %v1220
      %v1224 = vmul.f32 %v1217, %v1220
      %v1225 = vmul.f32 %v1218, %v1220
      %v1227 = vperm.slane %v1110, 0
      %v1229 = vadd.f32 %v1222, %v1227
      %v1230 = vadd.f32 %v1223, %v1227
      %v1231 = vadd.f32 %v1224, %v1227
      %v1232 = vadd.f32 %v1225, %v1227
      %v1233 = vmax.f32 %v1229, 0.0
      %v1234 = vmax.f32 %v1230, 0.0
      %v1235 = vmax.f32 %v1231, 0.0
      %v1236 = vmax.f32 %v1232, 0.0
      %v1237 = vld [vmem:[%s15] sm:$0x1]
      %v1239 = vperm.slane %v1237, 0
      %v1241 = vmul.f32 %v1233, %v1239
      %v1242 = vmul.f32 %v1234, %v1239
      %v1243 = vmul.f32 %v1235, %v1239
      %v1244 = vmul.f32 %v1236, %v1239
      %v1245 = vsel %vm1111, %v1241, 0.0
      %1246 = vadd.xlane.f32.xlu0 %v1245
      %v1247 = vpop.xlane.xlu0 %1246
      %v1248 = vsel %vm1111, %v1242, 0.0
      %1249 = vadd.xlane.f32.xlu0 %v1248
      %v1250 = vpop.xlane.xlu0 %1249
      %v1251 = vsel %vm1111, %v1243, 0.0
      %1252 = vadd.xlane.f32.xlu0 %v1251
      %v1253 = vpop.xlane.xlu0 %1252
      %v1254 = vsel %vm1111, %v1244, 0.0
      %1255 = vadd.xlane.f32.xlu0 %v1254
      %v1256 = vpop.xlane.xlu0 %1255
      %v1257 = vld [vmem:[#allocation2] sm:$0x1]
      %v1259 = vperm.slane %v1257, 0
      %v1261 = vadd.f32 %v1247, %v1259
      %v1262 = vadd.f32 %v1250, %v1259
      %v1263 = vadd.f32 %v1253, %v1259
      %v1264 = vadd.f32 %v1256, %v1259
      %vm1265 = vcmask 7168
      %1266 = vst.msk [vmem:[%s552] sm:$0xff] %vm1265, %v1261
      %1267 = vst.msk [vmem:[%s552 + $0x8] sm:$0xff] %vm1265, %v1262
      %1268 = vst.msk [vmem:[%s552 + $0x10] sm:$0xff] %vm1265, %v1263
      %1269 = vst.msk [vmem:[%s552 + $0x18] sm:$0xff] %vm1265, %v1264
      %s1270 = smul.u32 4, %s30
      %p1271 = scmp.lt.s32.totalorder %s1270, 7
      %s1272 = scalar_select %p1271, %s1270, 7
      %s1273 = smul.addr %s1272, 8
      %s1274 = scalar_lea.vmem %s17, %s1273
      // Predicated region
      $region89: #{tpu_custom_call.1} parent=87 // pred_check
        %p1275 = pneg %p410
      $region90: #{tpu_custom_call.1} parent=87 // pred_check_branch
        %1277 = sbr.rel (%p1275) target = $region92
      $region91: #{tpu_custom_call.1} parent=87 // pred_region
        %s1278 = smul.u32 4, %s30
      $region92: #{tpu_custom_call.1} parent=87 // pred_fallthru
        _
    $region88: #{tpu_custom_call.1} parent=5 // pred_fallthru
      _
    %p1279 = scmp.le.s32.totalorder 2, %s25
    // Predicated region
    $region93: #{tpu_custom_call.1} parent=5 // pred_check
      %p1280 = pneg %p1279
    $region94: #{tpu_custom_call.1} parent=5 // pred_check_branch
      %1282 = sbr.rel (%p1280) target = $region96
    $region95: #{tpu_custom_call.1} parent=5 // pred_region
      %s1283 = ssub.s32 %s25, 2
      // Predicated region
      $region97: #{tpu_custom_call.1} parent=95 // pred_check
        %p1284 = pneg %p416
      $region98: #{tpu_custom_call.1} parent=95 // pred_check_branch
        %1286 = sbr.rel (%p1284) target = $region100
      $region99: #{tpu_custom_call.1} parent=95 // pred_region
        %s1287 = smul.u32 4, %s31
        %p1288 = scmp.lt.s32.totalorder %s1287, 7
        %s1289 = scalar_select %p1288, %s1287, 7
        %s1290 = smul.addr %s1289, 8
        %s1291 = scalar_lea.vmem %s17, %s1290
      $region100: #{tpu_custom_call.1} parent=95 // pred_fallthru
        _
    $region96: #{tpu_custom_call.1} parent=5 // pred_fallthru
      _
  $region6: #{tpu_custom_call.1} parent=0 // loop_footer
    %s29 = sadd.s32 1, %s25
  $region7: #{tpu_custom_call.1} parent=0 // loop_footer_branch
    %24 = sbr.rel target = $region3
  $region8: #{tpu_custom_call.1} parent=0 // loop_exit
    _

</llo_original>
